<compile_context>
chip_gen: v5e
topology: v5e:2x2
jax: 0.10.0
libtpu: 0.0.40
codegen_flags: <defaults>
</compile_context>

<pallas_src>
import jax
import jax.numpy as jnp
from jax.experimental import pallas as pl
from jax.experimental.pallas import tpu as pltpu


# ----------------------------------------------------------------------------
# Fused kernel: GRU question encoder + 2-hop stacked attention + classifier
# ----------------------------------------------------------------------------
def fused_kernel(x2d_ref,                     # (L*B, E) time-major embedded question
                 wih_ref, bih_ref,            # (E, 6H), (1, 6H)  fwd|bwd input proj (concat)
                 whh_f_ref, bhh_f_ref,        # (H, 3H), (1, 3H)
                 whh_b_ref, bhh_b_ref,        # (H, 3H), (1, 3H)
                 img_ref,                     # (B*R, M) region-major image features
                 wq1_ref, bq1_ref,            # (M, K), (1, K)
                 wq2_ref, bq2_ref,            # (M, K), (1, K)
                 wi12_ref,                    # (M, 2K) hop1|hop2 image proj (concat, no bias)
                 we1_ref, be1_ref,            # (1, K), (1, 1)
                 we2_ref, be2_ref,            # (1, K), (1, 1)
                 wfc_ref, bfc_ref,            # (M, C), (1, C)
                 out_ref):                    # (B, C) log-probs
    f32 = jnp.float32
    B, C = out_ref.shape
    H = whh_f_ref.shape[0]
    L = x2d_ref.shape[0] // B
    M = img_ref.shape[1]
    R = img_ref.shape[0] // B
    K = wq1_ref.shape[1]

    # ---------------- bidirectional GRU (PyTorch gate order r, z, n) ----------------
    # Hoisted input projection: one matmul for all timesteps of both directions.
    gx_all = jnp.dot(x2d_ref[...], wih_ref[...],
                     preferred_element_type=f32) + bih_ref[...]          # (L*B, 6H)

    whh_f = whh_f_ref[...]
    bhh_f = bhh_f_ref[...]
    whh_b = whh_b_ref[...]
    bhh_b = bhh_b_ref[...]

    def cell(gx, h, whh, bhh):
        gh = jnp.dot(h, whh, preferred_element_type=f32) + bhh
        r = jax.nn.sigmoid(gx[:, 0:H] + gh[:, 0:H])
        z = jax.nn.sigmoid(gx[:, H:2 * H] + gh[:, H:2 * H])
        n = jnp.tanh(gx[:, 2 * H:3 * H] + r * gh[:, 2 * H:3 * H])
        return (1.0 - z) * n + z * h

    h_f = jnp.zeros((B, H), f32)
    h_b = jnp.zeros((B, H), f32)
    # Fused fwd/bwd recurrence, fully unrolled (L is small & static) so the LLO
    # scheduler can interleave the two independent serial chains.
    for t in range(L):
        gx_f = gx_all[t * B:(t + 1) * B, 0:3 * H]
        gx_b = gx_all[(L - 1 - t) * B:(L - t) * B, 3 * H:6 * H]
        h_f = cell(gx_f, h_f, whh_f, bhh_f)
        h_b = cell(gx_b, h_b, whh_b, bhh_b)

    q = jnp.concatenate([h_f, h_b], axis=1)                              # (B, 2H) == (B, M)

    # ---------------- stacked attention (batched over B) ----------------
    img2d = img_ref[...]                                                 # (B*R, M)
    # Question-independent image projections for BOTH hops in one matmul.
    di_all = jnp.dot(img2d, wi12_ref[...], preferred_element_type=f32)   # (B*R, 2K)
    di1 = di_all[:, 0:K].reshape(B, R, K)
    di2 = di_all[:, K:2 * K].reshape(B, R, K)
    img3d = img2d.reshape(B, R, M)

    def hop(qv, di, wq, bq, we, be):
        dq = jnp.dot(qv, wq[...], preferred_element_type=f32) + bq[...]  # (B, K)
        hA = jnp.tanh(di + dq[:, None, :])                               # (B, R, K)
        e = jnp.sum(hA * we[...], axis=-1, keepdims=True) + be[...]      # (B, R, 1)
        m = jnp.max(e, axis=1, keepdims=True)                            # (B, 1, 1)
        p = jnp.exp(e - m)
        inv = pl.reciprocal(jnp.sum(p, axis=1, keepdims=True), approx=True)
        alpha = p * inv                                                  # (B, R, 1)
        ctx = jnp.sum(img3d * alpha, axis=1, keepdims=True).reshape(B, M)
        return ctx + qv

    v1 = hop(q, di1, wq1_ref, bq1_ref, we1_ref, be1_ref)
    v2 = hop(v1, di2, wq2_ref, bq2_ref, we2_ref, be2_ref)

    # classifier + exact log_softmax
    logits = jnp.dot(v2, wfc_ref[...], preferred_element_type=f32) + bfc_ref[...]  # (B, C)
    mmax = jnp.max(logits, axis=-1, keepdims=True)
    sh = logits - mmax
    out_ref[...] = sh - jnp.log(jnp.sum(jnp.exp(sh), axis=-1, keepdims=True))


# ----------------------------------------------------------------------------
# Wrapper
# ----------------------------------------------------------------------------
def _vmem_specs(n):
    return [pl.BlockSpec(memory_space=pltpu.MemorySpace.VMEM) for _ in range(n)]


def stacked_attention_forward(question, image, params):
    """question: (B, L) int32, image: (B, M, H, W) fp32 (NCHW like PyTorch)."""
    B, M = image.shape[0], image.shape[1]
    R = image.shape[2] * image.shape[3]
    L = question.shape[1]
    C = params["bfc"].shape[1]

    # glue: image.view(B, M, -1).permute(0, 2, 1) -> (B, R, M), flattened to (B*R, M)
    img2d = image.reshape(B, M, R).transpose(0, 2, 1).reshape(B * R, M).astype(jnp.float32)
    # glue: embedding gather (padding_idx=0 row is zero in the table), time-major rows
    emb = params["emb"][question]                                        # (B, L, E)
    x2d = jnp.transpose(emb, (1, 0, 2)).reshape(L * B, emb.shape[-1])    # (L*B, E)

    # pack small weight matrices into wider operands (one matmul instead of many)
    wih_cat = jnp.concatenate([params["wih_f_t"], params["wih_b_t"]], axis=1)  # (E, 6H)
    bih_cat = jnp.concatenate([params["bih_f"], params["bih_b"]], axis=1)      # (1, 6H)
    wi12 = jnp.concatenate([params["wi1_t"], params["wi2_t"]], axis=1)         # (M, 2K)

    return pl.pallas_call(
        fused_kernel,
        out_shape=jax.ShapeDtypeStruct((B, C), jnp.float32),
        in_specs=_vmem_specs(19),
        out_specs=pl.BlockSpec(memory_space=pltpu.MemorySpace.VMEM),
    )(x2d, wih_cat, bih_cat,
      params["whh_f_t"], params["bhh_f"], params["whh_b_t"], params["bhh_b"],
      img2d,
      params["wq1_t"], params["bq1"], params["wq2_t"], params["bq2"], wi12,
      params["we1"], params["be1"], params["we2"], params["be2"],
      params["wfc_t"], params["bfc"])


# ----------------------------------------------------------------------------
# Deterministic parameter init (synthetic, matches the module's shapes)
# ----------------------------------------------------------------------------
def init_params(key, vocab, E, M, K, C):
    H = M // 2
    ks = jax.random.split(key, 21)

    def u(k, shape, scale=0.1):
        return jax.random.uniform(k, shape, jnp.float32, minval=-scale, maxval=scale)

    p = {}
    p["emb"] = u(ks[0], (vocab, E)).at[0].set(0.0)       # nn.Embedding, padding_idx=0
    # nn.GRU(E, M//2, bidirectional) -- stored pre-transposed, gate order (r,z,n)
    p["wih_f_t"] = u(ks[1], (E, 3 * H))
    p["whh_f_t"] = u(ks[2], (H, 3 * H))
    p["bih_f"] = u(ks[3], (1, 3 * H))
    p["bhh_f"] = u(ks[4], (1, 3 * H))
    p["wih_b_t"] = u(ks[5], (E, 3 * H))
    p["whh_b_t"] = u(ks[6], (H, 3 * H))
    p["bih_b"] = u(ks[7], (1, 3 * H))
    p["bhh_b"] = u(ks[8], (1, 3 * H))
    # hop 1
    p["wq1_t"] = u(ks[9], (M, K))      # img_weight_k1 (applied to question emb)
    p["bq1"] = u(ks[10], (1, K))
    p["wi1_t"] = u(ks[11], (M, K))     # que_weights_k1 (applied to image, no bias)
    p["we1"] = u(ks[12], (1, K))       # energy_k1 weight
    p["be1"] = u(ks[13], (1, 1))       # energy_k1 bias
    # hop 2
    p["wq2_t"] = u(ks[14], (M, K))
    p["bq2"] = u(ks[15], (1, K))
    p["wi2_t"] = u(ks[16], (M, K))
    p["we2"] = u(ks[17], (1, K))
    p["be2"] = u(ks[18], (1, 1))
    # fc1
    p["wfc_t"] = u(ks[19], (M, C))
    p["bfc"] = u(ks[20], (1, C))
    # TODO(synk): self.v (nn.Parameter) is never used in forward(); omitted.
    return p


# ----------------------------------------------------------------------------
# Pure-JAX reference (same math) for validation
# ----------------------------------------------------------------------------
def reference_forward(question, image, p):
    B, M = image.shape[0], image.shape[1]
    H = p["whh_f_t"].shape[0]
    img = image.reshape(B, M, -1).transpose(0, 2, 1)
    emb = p["emb"][question]
    L = emb.shape[1]

    def gru_dir(wih_t, whh_t, bih, bhh, reverse):
        h = jnp.zeros((B, H), jnp.float32)
        order = range(L - 1, -1, -1) if reverse else range(L)
        for t in order:
            x_t = emb[:, t, :]
            gx = x_t @ wih_t + bih
            gh = h @ whh_t + bhh
            r = jax.nn.sigmoid(gx[:, :H] + gh[:, :H])
            z = jax.nn.sigmoid(gx[:, H:2 * H] + gh[:, H:2 * H])
            n = jnp.tanh(gx[:, 2 * H:] + r * gh[:, 2 * H:])
            h = (1.0 - z) * n + z * h
        return h

    h_f = gru_dir(p["wih_f_t"], p["whh_f_t"], p["bih_f"], p["bhh_f"], False)
    h_b = gru_dir(p["wih_b_t"], p["whh_b_t"], p["bih_b"], p["bhh_b"], True)
    q = jnp.concatenate([h_f, h_b], axis=1)

    def hop(q, wq_t, bq, wi_t, we, be):
        dq = q @ wq_t + bq                                        # (B, K)
        di = jnp.einsum("brm,mk->brk", img, wi_t)                 # (B, R, K)
        hA = jnp.tanh(di + dq[:, None, :])
        e = jnp.sum(hA * we, axis=-1, keepdims=True) + be[0, 0]   # (B, R, 1)
        alpha = jax.nn.softmax(e, axis=1)
        ctx = jnp.sum(img * alpha, axis=1)
        return ctx + q

    v1 = hop(q, p["wq1_t"], p["bq1"], p["wi1_t"], p["we1"], p["be1"])
    v2 = hop(v1, p["wq2_t"], p["bq2"], p["wi2_t"], p["we2"], p["be2"])
    logits = v2 @ p["wfc_t"] + p["bfc"]
    return jax.nn.log_softmax(logits, axis=1)


if __name__ == "__main__":
    # Small shapes consistent with the module's forward semantics.
    B, L = 2, 8
    VOCAB, E, M, K, C = 64, 32, 64, 32, 16     # img_maps=M (even), k=K, num_classes=C
    Himg, Wimg = 4, 4                          # R = 16 image regions

    key = jax.random.PRNGKey(0)
    k_q, k_img, k_p = jax.random.split(key, 3)
    question = jax.random.randint(k_q, (B, L), 0, VOCAB, dtype=jnp.int32)
    image = jax.random.normal(k_img, (B, M, Himg, Wimg), jnp.float32)
    params = init_params(k_p, VOCAB, E, M, K, C)

    out = stacked_attention_forward(question, image, params)
    out = jax.block_until_ready(out)

    ref = reference_forward(question, image, params)
    assert out.shape == (B, C), out.shape
    # Tolerance loosened slightly vs exact-f32 because the attention softmax
    # normalization uses the EUP approximate reciprocal (pl.reciprocal approx=True).
    assert jnp.allclose(out, ref, atol=2e-3, rtol=2e-3), float(jnp.max(jnp.abs(out - ref)))
    print("KERNEL_OK")
</pallas_src>

<mosaic_0001>
module attributes {stable_mosaic.version = 11 : i64} {
  func.func @fused_kernel(%arg0: memref<16x32xf32, #tpu.memory_space<vmem>>, %arg1: memref<32x192xf32, #tpu.memory_space<vmem>>, %arg2: memref<1x192xf32, #tpu.memory_space<vmem>>, %arg3: memref<32x96xf32, #tpu.memory_space<vmem>>, %arg4: memref<1x96xf32, #tpu.memory_space<vmem>>, %arg5: memref<32x96xf32, #tpu.memory_space<vmem>>, %arg6: memref<1x96xf32, #tpu.memory_space<vmem>>, %arg7: memref<32x64xf32, #tpu.memory_space<vmem>>, %arg8: memref<64x32xf32, #tpu.memory_space<vmem>>, %arg9: memref<1x32xf32, #tpu.memory_space<vmem>>, %arg10: memref<64x32xf32, #tpu.memory_space<vmem>>, %arg11: memref<1x32xf32, #tpu.memory_space<vmem>>, %arg12: memref<64x64xf32, #tpu.memory_space<vmem>>, %arg13: memref<1x32xf32, #tpu.memory_space<vmem>>, %arg14: memref<1x1xf32, #tpu.memory_space<vmem>>, %arg15: memref<1x32xf32, #tpu.memory_space<vmem>>, %arg16: memref<1x1xf32, #tpu.memory_space<vmem>>, %arg17: memref<64x16xf32, #tpu.memory_space<vmem>>, %arg18: memref<1x16xf32, #tpu.memory_space<vmem>>, %arg19: memref<2x16xf32, #tpu.memory_space<vmem>>) attributes {dimension_semantics = [], scalar_prefetch = 0 : i64, scratch_operands = 0 : i64, tpu.core_type = #tpu.core_type<tc>} {
    %c0 = arith.constant 0 : index
    %c0_0 = arith.constant 0 : index
    %0 = vector.load %arg0[%c0, %c0_0] : memref<16x32xf32, #tpu.memory_space<vmem>>, vector<16x32xf32>
    %c0_1 = arith.constant 0 : index
    %c0_2 = arith.constant 0 : index
    %1 = vector.load %arg1[%c0_1, %c0_2] : memref<32x192xf32, #tpu.memory_space<vmem>>, vector<32x192xf32>
    %cst = arith.constant dense<0.000000e+00> : vector<16x192xf32>
    %2 = tpu.matmul %0, %1, %cst {dimension_numbers = #tpu.dot_dimension_numbers<[1], [0], [0], [1], [0, 0, 1, 1], [], []>} : vector<16x32xf32>, vector<32x192xf32>, vector<16x192xf32> -> vector<16x192xf32>
    %c0_3 = arith.constant 0 : index
    %c0_4 = arith.constant 0 : index
    %3 = vector.load %arg2[%c0_3, %c0_4] : memref<1x192xf32, #tpu.memory_space<vmem>>, vector<1x192xf32>
    %4 = vector.broadcast %3 : vector<1x192xf32> to vector<16x192xf32>
    %5 = arith.addf %2, %4 : vector<16x192xf32>
    %c0_5 = arith.constant 0 : index
    %c0_6 = arith.constant 0 : index
    %6 = vector.load %arg3[%c0_5, %c0_6] : memref<32x96xf32, #tpu.memory_space<vmem>>, vector<32x96xf32>
    %c0_7 = arith.constant 0 : index
    %c0_8 = arith.constant 0 : index
    %7 = vector.load %arg4[%c0_7, %c0_8] : memref<1x96xf32, #tpu.memory_space<vmem>>, vector<1x96xf32>
    %c0_9 = arith.constant 0 : index
    %c0_10 = arith.constant 0 : index
    %8 = vector.load %arg5[%c0_9, %c0_10] : memref<32x96xf32, #tpu.memory_space<vmem>>, vector<32x96xf32>
    %c0_11 = arith.constant 0 : index
    %c0_12 = arith.constant 0 : index
    %9 = vector.load %arg6[%c0_11, %c0_12] : memref<1x96xf32, #tpu.memory_space<vmem>>, vector<1x96xf32>
    %cst_13 = arith.constant 0.000000e+00 : f32
    %10 = vector.broadcast %cst_13 : f32 to vector<2x32xf32>
    %cst_14 = arith.constant 0.000000e+00 : f32
    %11 = vector.broadcast %cst_14 : f32 to vector<2x32xf32>
    %12 = vector.extract_strided_slice %5 {offsets = [0, 0], sizes = [2, 96], strides = [1, 1]} : vector<16x192xf32> to vector<2x96xf32>
    %13 = vector.extract_strided_slice %5 {offsets = [14, 96], sizes = [2, 96], strides = [1, 1]} : vector<16x192xf32> to vector<2x96xf32>
    %cst_15 = arith.constant dense<0.000000e+00> : vector<2x96xf32>
    %14 = tpu.matmul %10, %6, %cst_15 {dimension_numbers = #tpu.dot_dimension_numbers<[1], [0], [0], [1], [0, 0, 1, 1], [], []>} : vector<2x32xf32>, vector<32x96xf32>, vector<2x96xf32> -> vector<2x96xf32>
    %15 = vector.broadcast %7 : vector<1x96xf32> to vector<2x96xf32>
    %16 = arith.addf %14, %15 : vector<2x96xf32>
    %17 = vector.extract_strided_slice %12 {offsets = [0, 0], sizes = [2, 32], strides = [1, 1]} : vector<2x96xf32> to vector<2x32xf32>
    %18 = vector.extract_strided_slice %16 {offsets = [0, 0], sizes = [2, 32], strides = [1, 1]} : vector<2x96xf32> to vector<2x32xf32>
    %19 = arith.addf %17, %18 : vector<2x32xf32>
    %20 = arith.negf %19 : vector<2x32xf32>
    %21 = math.exp %20 : vector<2x32xf32>
    %cst_16 = arith.constant 1.000000e+00 : f32
    %22 = vector.broadcast %cst_16 : f32 to vector<2x32xf32>
    %23 = arith.addf %22, %21 : vector<2x32xf32>
    %24 = arith.divf %22, %23 : vector<2x32xf32>
    %25 = vector.extract_strided_slice %12 {offsets = [0, 32], sizes = [2, 32], strides = [1, 1]} : vector<2x96xf32> to vector<2x32xf32>
    %26 = vector.extract_strided_slice %16 {offsets = [0, 32], sizes = [2, 32], strides = [1, 1]} : vector<2x96xf32> to vector<2x32xf32>
    %27 = arith.addf %25, %26 : vector<2x32xf32>
    %28 = arith.negf %27 : vector<2x32xf32>
    %29 = math.exp %28 : vector<2x32xf32>
    %cst_17 = arith.constant 1.000000e+00 : f32
    %30 = vector.broadcast %cst_17 : f32 to vector<2x32xf32>
    %31 = arith.addf %30, %29 : vector<2x32xf32>
    %32 = arith.divf %30, %31 : vector<2x32xf32>
    %33 = vector.extract_strided_slice %12 {offsets = [0, 64], sizes = [2, 32], strides = [1, 1]} : vector<2x96xf32> to vector<2x32xf32>
    %34 = vector.extract_strided_slice %16 {offsets = [0, 64], sizes = [2, 32], strides = [1, 1]} : vector<2x96xf32> to vector<2x32xf32>
    %35 = arith.mulf %24, %34 : vector<2x32xf32>
    %36 = arith.addf %33, %35 : vector<2x32xf32>
    %37 = math.tanh %36 : vector<2x32xf32>
    %cst_18 = arith.constant 1.000000e+00 : f32
    %38 = vector.broadcast %cst_18 : f32 to vector<2x32xf32>
    %39 = arith.subf %38, %32 : vector<2x32xf32>
    %40 = arith.mulf %39, %37 : vector<2x32xf32>
    %41 = arith.mulf %32, %10 : vector<2x32xf32>
    %42 = arith.addf %40, %41 : vector<2x32xf32>
    %cst_19 = arith.constant dense<0.000000e+00> : vector<2x96xf32>
    %43 = tpu.matmul %11, %8, %cst_19 {dimension_numbers = #tpu.dot_dimension_numbers<[1], [0], [0], [1], [0, 0, 1, 1], [], []>} : vector<2x32xf32>, vector<32x96xf32>, vector<2x96xf32> -> vector<2x96xf32>
    %44 = vector.broadcast %9 : vector<1x96xf32> to vector<2x96xf32>
    %45 = arith.addf %43, %44 : vector<2x96xf32>
    %46 = vector.extract_strided_slice %13 {offsets = [0, 0], sizes = [2, 32], strides = [1, 1]} : vector<2x96xf32> to vector<2x32xf32>
    %47 = vector.extract_strided_slice %45 {offsets = [0, 0], sizes = [2, 32], strides = [1, 1]} : vector<2x96xf32> to vector<2x32xf32>
    %48 = arith.addf %46, %47 : vector<2x32xf32>
    %49 = arith.negf %48 : vector<2x32xf32>
    %50 = math.exp %49 : vector<2x32xf32>
    %cst_20 = arith.constant 1.000000e+00 : f32
    %51 = vector.broadcast %cst_20 : f32 to vector<2x32xf32>
    %52 = arith.addf %51, %50 : vector<2x32xf32>
    %53 = arith.divf %51, %52 : vector<2x32xf32>
    %54 = vector.extract_strided_slice %13 {offsets = [0, 32], sizes = [2, 32], strides = [1, 1]} : vector<2x96xf32> to vector<2x32xf32>
    %55 = vector.extract_strided_slice %45 {offsets = [0, 32], sizes = [2, 32], strides = [1, 1]} : vector<2x96xf32> to vector<2x32xf32>
    %56 = arith.addf %54, %55 : vector<2x32xf32>
    %57 = arith.negf %56 : vector<2x32xf32>
    %58 = math.exp %57 : vector<2x32xf32>
    %cst_21 = arith.constant 1.000000e+00 : f32
    %59 = vector.broadcast %cst_21 : f32 to vector<2x32xf32>
    %60 = arith.addf %59, %58 : vector<2x32xf32>
    %61 = arith.divf %59, %60 : vector<2x32xf32>
    %62 = vector.extract_strided_slice %13 {offsets = [0, 64], sizes = [2, 32], strides = [1, 1]} : vector<2x96xf32> to vector<2x32xf32>
    %63 = vector.extract_strided_slice %45 {offsets = [0, 64], sizes = [2, 32], strides = [1, 1]} : vector<2x96xf32> to vector<2x32xf32>
    %64 = arith.mulf %53, %63 : vector<2x32xf32>
    %65 = arith.addf %62, %64 : vector<2x32xf32>
    %66 = math.tanh %65 : vector<2x32xf32>
    %cst_22 = arith.constant 1.000000e+00 : f32
    %67 = vector.broadcast %cst_22 : f32 to vector<2x32xf32>
    %68 = arith.subf %67, %61 : vector<2x32xf32>
    %69 = arith.mulf %68, %66 : vector<2x32xf32>
    %70 = arith.mulf %61, %11 : vector<2x32xf32>
    %71 = arith.addf %69, %70 : vector<2x32xf32>
    %72 = vector.extract_strided_slice %5 {offsets = [2, 0], sizes = [2, 96], strides = [1, 1]} : vector<16x192xf32> to vector<2x96xf32>
    %73 = vector.extract_strided_slice %5 {offsets = [12, 96], sizes = [2, 96], strides = [1, 1]} : vector<16x192xf32> to vector<2x96xf32>
    %cst_23 = arith.constant dense<0.000000e+00> : vector<2x96xf32>
    %74 = tpu.matmul %42, %6, %cst_23 {dimension_numbers = #tpu.dot_dimension_numbers<[1], [0], [0], [1], [0, 0, 1, 1], [], []>} : vector<2x32xf32>, vector<32x96xf32>, vector<2x96xf32> -> vector<2x96xf32>
    %75 = vector.broadcast %7 : vector<1x96xf32> to vector<2x96xf32>
    %76 = arith.addf %74, %75 : vector<2x96xf32>
    %77 = vector.extract_strided_slice %72 {offsets = [0, 0], sizes = [2, 32], strides = [1, 1]} : vector<2x96xf32> to vector<2x32xf32>
    %78 = vector.extract_strided_slice %76 {offsets = [0, 0], sizes = [2, 32], strides = [1, 1]} : vector<2x96xf32> to vector<2x32xf32>
    %79 = arith.addf %77, %78 : vector<2x32xf32>
    %80 = arith.negf %79 : vector<2x32xf32>
    %81 = math.exp %80 : vector<2x32xf32>
    %cst_24 = arith.constant 1.000000e+00 : f32
    %82 = vector.broadcast %cst_24 : f32 to vector<2x32xf32>
    %83 = arith.addf %82, %81 : vector<2x32xf32>
    %84 = arith.divf %82, %83 : vector<2x32xf32>
    %85 = vector.extract_strided_slice %72 {offsets = [0, 32], sizes = [2, 32], strides = [1, 1]} : vector<2x96xf32> to vector<2x32xf32>
    %86 = vector.extract_strided_slice %76 {offsets = [0, 32], sizes = [2, 32], strides = [1, 1]} : vector<2x96xf32> to vector<2x32xf32>
    %87 = arith.addf %85, %86 : vector<2x32xf32>
    %88 = arith.negf %87 : vector<2x32xf32>
    %89 = math.exp %88 : vector<2x32xf32>
    %cst_25 = arith.constant 1.000000e+00 : f32
    %90 = vector.broadcast %cst_25 : f32 to vector<2x32xf32>
    %91 = arith.addf %90, %89 : vector<2x32xf32>
    %92 = arith.divf %90, %91 : vector<2x32xf32>
    %93 = vector.extract_strided_slice %72 {offsets = [0, 64], sizes = [2, 32], strides = [1, 1]} : vector<2x96xf32> to vector<2x32xf32>
    %94 = vector.extract_strided_slice %76 {offsets = [0, 64], sizes = [2, 32], strides = [1, 1]} : vector<2x96xf32> to vector<2x32xf32>
    %95 = arith.mulf %84, %94 : vector<2x32xf32>
    %96 = arith.addf %93, %95 : vector<2x32xf32>
    %97 = math.tanh %96 : vector<2x32xf32>
    %cst_26 = arith.constant 1.000000e+00 : f32
    %98 = vector.broadcast %cst_26 : f32 to vector<2x32xf32>
    %99 = arith.subf %98, %92 : vector<2x32xf32>
    %100 = arith.mulf %99, %97 : vector<2x32xf32>
    %101 = arith.mulf %92, %42 : vector<2x32xf32>
    %102 = arith.addf %100, %101 : vector<2x32xf32>
    %cst_27 = arith.constant dense<0.000000e+00> : vector<2x96xf32>
    %103 = tpu.matmul %71, %8, %cst_27 {dimension_numbers = #tpu.dot_dimension_numbers<[1], [0], [0], [1], [0, 0, 1, 1], [], []>} : vector<2x32xf32>, vector<32x96xf32>, vector<2x96xf32> -> vector<2x96xf32>
    %104 = vector.broadcast %9 : vector<1x96xf32> to vector<2x96xf32>
    %105 = arith.addf %103, %104 : vector<2x96xf32>
    %106 = vector.extract_strided_slice %73 {offsets = [0, 0], sizes = [2, 32], strides = [1, 1]} : vector<2x96xf32> to vector<2x32xf32>
    %107 = vector.extract_strided_slice %105 {offsets = [0, 0], sizes = [2, 32], strides = [1, 1]} : vector<2x96xf32> to vector<2x32xf32>
    %108 = arith.addf %106, %107 : vector<2x32xf32>
    %109 = arith.negf %108 : vector<2x32xf32>
    %110 = math.exp %109 : vector<2x32xf32>
    %cst_28 = arith.constant 1.000000e+00 : f32
    %111 = vector.broadcast %cst_28 : f32 to vector<2x32xf32>
    %112 = arith.addf %111, %110 : vector<2x32xf32>
    %113 = arith.divf %111, %112 : vector<2x32xf32>
    %114 = vector.extract_strided_slice %73 {offsets = [0, 32], sizes = [2, 32], strides = [1, 1]} : vector<2x96xf32> to vector<2x32xf32>
    %115 = vector.extract_strided_slice %105 {offsets = [0, 32], sizes = [2, 32], strides = [1, 1]} : vector<2x96xf32> to vector<2x32xf32>
    %116 = arith.addf %114, %115 : vector<2x32xf32>
    %117 = arith.negf %116 : vector<2x32xf32>
    %118 = math.exp %117 : vector<2x32xf32>
    %cst_29 = arith.constant 1.000000e+00 : f32
    %119 = vector.broadcast %cst_29 : f32 to vector<2x32xf32>
    %120 = arith.addf %119, %118 : vector<2x32xf32>
    %121 = arith.divf %119, %120 : vector<2x32xf32>
    %122 = vector.extract_strided_slice %73 {offsets = [0, 64], sizes = [2, 32], strides = [1, 1]} : vector<2x96xf32> to vector<2x32xf32>
    %123 = vector.extract_strided_slice %105 {offsets = [0, 64], sizes = [2, 32], strides = [1, 1]} : vector<2x96xf32> to vector<2x32xf32>
    %124 = arith.mulf %113, %123 : vector<2x32xf32>
    %125 = arith.addf %122, %124 : vector<2x32xf32>
    %126 = math.tanh %125 : vector<2x32xf32>
    %cst_30 = arith.constant 1.000000e+00 : f32
    %127 = vector.broadcast %cst_30 : f32 to vector<2x32xf32>
    %128 = arith.subf %127, %121 : vector<2x32xf32>
    %129 = arith.mulf %128, %126 : vector<2x32xf32>
    %130 = arith.mulf %121, %71 : vector<2x32xf32>
    %131 = arith.addf %129, %130 : vector<2x32xf32>
    %132 = vector.extract_strided_slice %5 {offsets = [4, 0], sizes = [2, 96], strides = [1, 1]} : vector<16x192xf32> to vector<2x96xf32>
    %133 = vector.extract_strided_slice %5 {offsets = [10, 96], sizes = [2, 96], strides = [1, 1]} : vector<16x192xf32> to vector<2x96xf32>
    %cst_31 = arith.constant dense<0.000000e+00> : vector<2x96xf32>
    %134 = tpu.matmul %102, %6, %cst_31 {dimension_numbers = #tpu.dot_dimension_numbers<[1], [0], [0], [1], [0, 0, 1, 1], [], []>} : vector<2x32xf32>, vector<32x96xf32>, vector<2x96xf32> -> vector<2x96xf32>
    %135 = vector.broadcast %7 : vector<1x96xf32> to vector<2x96xf32>
    %136 = arith.addf %134, %135 : vector<2x96xf32>
    %137 = vector.extract_strided_slice %132 {offsets = [0, 0], sizes = [2, 32], strides = [1, 1]} : vector<2x96xf32> to vector<2x32xf32>
    %138 = vector.extract_strided_slice %136 {offsets = [0, 0], sizes = [2, 32], strides = [1, 1]} : vector<2x96xf32> to vector<2x32xf32>
    %139 = arith.addf %137, %138 : vector<2x32xf32>
    %140 = arith.negf %139 : vector<2x32xf32>
    %141 = math.exp %140 : vector<2x32xf32>
    %cst_32 = arith.constant 1.000000e+00 : f32
    %142 = vector.broadcast %cst_32 : f32 to vector<2x32xf32>
    %143 = arith.addf %142, %141 : vector<2x32xf32>
    %144 = arith.divf %142, %143 : vector<2x32xf32>
    %145 = vector.extract_strided_slice %132 {offsets = [0, 32], sizes = [2, 32], strides = [1, 1]} : vector<2x96xf32> to vector<2x32xf32>
    %146 = vector.extract_strided_slice %136 {offsets = [0, 32], sizes = [2, 32], strides = [1, 1]} : vector<2x96xf32> to vector<2x32xf32>
    %147 = arith.addf %145, %146 : vector<2x32xf32>
    %148 = arith.negf %147 : vector<2x32xf32>
    %149 = math.exp %148 : vector<2x32xf32>
    %cst_33 = arith.constant 1.000000e+00 : f32
    %150 = vector.broadcast %cst_33 : f32 to vector<2x32xf32>
    %151 = arith.addf %150, %149 : vector<2x32xf32>
    %152 = arith.divf %150, %151 : vector<2x32xf32>
    %153 = vector.extract_strided_slice %132 {offsets = [0, 64], sizes = [2, 32], strides = [1, 1]} : vector<2x96xf32> to vector<2x32xf32>
    %154 = vector.extract_strided_slice %136 {offsets = [0, 64], sizes = [2, 32], strides = [1, 1]} : vector<2x96xf32> to vector<2x32xf32>
    %155 = arith.mulf %144, %154 : vector<2x32xf32>
    %156 = arith.addf %153, %155 : vector<2x32xf32>
    %157 = math.tanh %156 : vector<2x32xf32>
    %cst_34 = arith.constant 1.000000e+00 : f32
    %158 = vector.broadcast %cst_34 : f32 to vector<2x32xf32>
    %159 = arith.subf %158, %152 : vector<2x32xf32>
    %160 = arith.mulf %159, %157 : vector<2x32xf32>
    %161 = arith.mulf %152, %102 : vector<2x32xf32>
    %162 = arith.addf %160, %161 : vector<2x32xf32>
    %cst_35 = arith.constant dense<0.000000e+00> : vector<2x96xf32>
    %163 = tpu.matmul %131, %8, %cst_35 {dimension_numbers = #tpu.dot_dimension_numbers<[1], [0], [0], [1], [0, 0, 1, 1], [], []>} : vector<2x32xf32>, vector<32x96xf32>, vector<2x96xf32> -> vector<2x96xf32>
    %164 = vector.broadcast %9 : vector<1x96xf32> to vector<2x96xf32>
    %165 = arith.addf %163, %164 : vector<2x96xf32>
    %166 = vector.extract_strided_slice %133 {offsets = [0, 0], sizes = [2, 32], strides = [1, 1]} : vector<2x96xf32> to vector<2x32xf32>
    %167 = vector.extract_strided_slice %165 {offsets = [0, 0], sizes = [2, 32], strides = [1, 1]} : vector<2x96xf32> to vector<2x32xf32>
    %168 = arith.addf %166, %167 : vector<2x32xf32>
    %169 = arith.negf %168 : vector<2x32xf32>
    %170 = math.exp %169 : vector<2x32xf32>
    %cst_36 = arith.constant 1.000000e+00 : f32
    %171 = vector.broadcast %cst_36 : f32 to vector<2x32xf32>
    %172 = arith.addf %171, %170 : vector<2x32xf32>
    %173 = arith.divf %171, %172 : vector<2x32xf32>
    %174 = vector.extract_strided_slice %133 {offsets = [0, 32], sizes = [2, 32], strides = [1, 1]} : vector<2x96xf32> to vector<2x32xf32>
    %175 = vector.extract_strided_slice %165 {offsets = [0, 32], sizes = [2, 32], strides = [1, 1]} : vector<2x96xf32> to vector<2x32xf32>
    %176 = arith.addf %174, %175 : vector<2x32xf32>
    %177 = arith.negf %176 : vector<2x32xf32>
    %178 = math.exp %177 : vector<2x32xf32>
    %cst_37 = arith.constant 1.000000e+00 : f32
    %179 = vector.broadcast %cst_37 : f32 to vector<2x32xf32>
    %180 = arith.addf %179, %178 : vector<2x32xf32>
    %181 = arith.divf %179, %180 : vector<2x32xf32>
    %182 = vector.extract_strided_slice %133 {offsets = [0, 64], sizes = [2, 32], strides = [1, 1]} : vector<2x96xf32> to vector<2x32xf32>
    %183 = vector.extract_strided_slice %165 {offsets = [0, 64], sizes = [2, 32], strides = [1, 1]} : vector<2x96xf32> to vector<2x32xf32>
    %184 = arith.mulf %173, %183 : vector<2x32xf32>
    %185 = arith.addf %182, %184 : vector<2x32xf32>
    %186 = math.tanh %185 : vector<2x32xf32>
    %cst_38 = arith.constant 1.000000e+00 : f32
    %187 = vector.broadcast %cst_38 : f32 to vector<2x32xf32>
    %188 = arith.subf %187, %181 : vector<2x32xf32>
    %189 = arith.mulf %188, %186 : vector<2x32xf32>
    %190 = arith.mulf %181, %131 : vector<2x32xf32>
    %191 = arith.addf %189, %190 : vector<2x32xf32>
    %192 = vector.extract_strided_slice %5 {offsets = [6, 0], sizes = [2, 96], strides = [1, 1]} : vector<16x192xf32> to vector<2x96xf32>
    %193 = vector.extract_strided_slice %5 {offsets = [8, 96], sizes = [2, 96], strides = [1, 1]} : vector<16x192xf32> to vector<2x96xf32>
    %cst_39 = arith.constant dense<0.000000e+00> : vector<2x96xf32>
    %194 = tpu.matmul %162, %6, %cst_39 {dimension_numbers = #tpu.dot_dimension_numbers<[1], [0], [0], [1], [0, 0, 1, 1], [], []>} : vector<2x32xf32>, vector<32x96xf32>, vector<2x96xf32> -> vector<2x96xf32>
    %195 = vector.broadcast %7 : vector<1x96xf32> to vector<2x96xf32>
    %196 = arith.addf %194, %195 : vector<2x96xf32>
    %197 = vector.extract_strided_slice %192 {offsets = [0, 0], sizes = [2, 32], strides = [1, 1]} : vector<2x96xf32> to vector<2x32xf32>
    %198 = vector.extract_strided_slice %196 {offsets = [0, 0], sizes = [2, 32], strides = [1, 1]} : vector<2x96xf32> to vector<2x32xf32>
    %199 = arith.addf %197, %198 : vector<2x32xf32>
    %200 = arith.negf %199 : vector<2x32xf32>
    %201 = math.exp %200 : vector<2x32xf32>
    %cst_40 = arith.constant 1.000000e+00 : f32
    %202 = vector.broadcast %cst_40 : f32 to vector<2x32xf32>
    %203 = arith.addf %202, %201 : vector<2x32xf32>
    %204 = arith.divf %202, %203 : vector<2x32xf32>
    %205 = vector.extract_strided_slice %192 {offsets = [0, 32], sizes = [2, 32], strides = [1, 1]} : vector<2x96xf32> to vector<2x32xf32>
    %206 = vector.extract_strided_slice %196 {offsets = [0, 32], sizes = [2, 32], strides = [1, 1]} : vector<2x96xf32> to vector<2x32xf32>
    %207 = arith.addf %205, %206 : vector<2x32xf32>
    %208 = arith.negf %207 : vector<2x32xf32>
    %209 = math.exp %208 : vector<2x32xf32>
    %cst_41 = arith.constant 1.000000e+00 : f32
    %210 = vector.broadcast %cst_41 : f32 to vector<2x32xf32>
    %211 = arith.addf %210, %209 : vector<2x32xf32>
    %212 = arith.divf %210, %211 : vector<2x32xf32>
    %213 = vector.extract_strided_slice %192 {offsets = [0, 64], sizes = [2, 32], strides = [1, 1]} : vector<2x96xf32> to vector<2x32xf32>
    %214 = vector.extract_strided_slice %196 {offsets = [0, 64], sizes = [2, 32], strides = [1, 1]} : vector<2x96xf32> to vector<2x32xf32>
    %215 = arith.mulf %204, %214 : vector<2x32xf32>
    %216 = arith.addf %213, %215 : vector<2x32xf32>
    %217 = math.tanh %216 : vector<2x32xf32>
    %cst_42 = arith.constant 1.000000e+00 : f32
    %218 = vector.broadcast %cst_42 : f32 to vector<2x32xf32>
    %219 = arith.subf %218, %212 : vector<2x32xf32>
    %220 = arith.mulf %219, %217 : vector<2x32xf32>
    %221 = arith.mulf %212, %162 : vector<2x32xf32>
    %222 = arith.addf %220, %221 : vector<2x32xf32>
    %cst_43 = arith.constant dense<0.000000e+00> : vector<2x96xf32>
    %223 = tpu.matmul %191, %8, %cst_43 {dimension_numbers = #tpu.dot_dimension_numbers<[1], [0], [0], [1], [0, 0, 1, 1], [], []>} : vector<2x32xf32>, vector<32x96xf32>, vector<2x96xf32> -> vector<2x96xf32>
    %224 = vector.broadcast %9 : vector<1x96xf32> to vector<2x96xf32>
    %225 = arith.addf %223, %224 : vector<2x96xf32>
    %226 = vector.extract_strided_slice %193 {offsets = [0, 0], sizes = [2, 32], strides = [1, 1]} : vector<2x96xf32> to vector<2x32xf32>
    %227 = vector.extract_strided_slice %225 {offsets = [0, 0], sizes = [2, 32], strides = [1, 1]} : vector<2x96xf32> to vector<2x32xf32>
    %228 = arith.addf %226, %227 : vector<2x32xf32>
    %229 = arith.negf %228 : vector<2x32xf32>
    %230 = math.exp %229 : vector<2x32xf32>
    %cst_44 = arith.constant 1.000000e+00 : f32
    %231 = vector.broadcast %cst_44 : f32 to vector<2x32xf32>
    %232 = arith.addf %231, %230 : vector<2x32xf32>
    %233 = arith.divf %231, %232 : vector<2x32xf32>
    %234 = vector.extract_strided_slice %193 {offsets = [0, 32], sizes = [2, 32], strides = [1, 1]} : vector<2x96xf32> to vector<2x32xf32>
    %235 = vector.extract_strided_slice %225 {offsets = [0, 32], sizes = [2, 32], strides = [1, 1]} : vector<2x96xf32> to vector<2x32xf32>
    %236 = arith.addf %234, %235 : vector<2x32xf32>
    %237 = arith.negf %236 : vector<2x32xf32>
    %238 = math.exp %237 : vector<2x32xf32>
    %cst_45 = arith.constant 1.000000e+00 : f32
    %239 = vector.broadcast %cst_45 : f32 to vector<2x32xf32>
    %240 = arith.addf %239, %238 : vector<2x32xf32>
    %241 = arith.divf %239, %240 : vector<2x32xf32>
    %242 = vector.extract_strided_slice %193 {offsets = [0, 64], sizes = [2, 32], strides = [1, 1]} : vector<2x96xf32> to vector<2x32xf32>
    %243 = vector.extract_strided_slice %225 {offsets = [0, 64], sizes = [2, 32], strides = [1, 1]} : vector<2x96xf32> to vector<2x32xf32>
    %244 = arith.mulf %233, %243 : vector<2x32xf32>
    %245 = arith.addf %242, %244 : vector<2x32xf32>
    %246 = math.tanh %245 : vector<2x32xf32>
    %cst_46 = arith.constant 1.000000e+00 : f32
    %247 = vector.broadcast %cst_46 : f32 to vector<2x32xf32>
    %248 = arith.subf %247, %241 : vector<2x32xf32>
    %249 = arith.mulf %248, %246 : vector<2x32xf32>
    %250 = arith.mulf %241, %191 : vector<2x32xf32>
    %251 = arith.addf %249, %250 : vector<2x32xf32>
    %252 = vector.extract_strided_slice %5 {offsets = [8, 0], sizes = [2, 96], strides = [1, 1]} : vector<16x192xf32> to vector<2x96xf32>
    %253 = vector.extract_strided_slice %5 {offsets = [6, 96], sizes = [2, 96], strides = [1, 1]} : vector<16x192xf32> to vector<2x96xf32>
    %cst_47 = arith.constant dense<0.000000e+00> : vector<2x96xf32>
    %254 = tpu.matmul %222, %6, %cst_47 {dimension_numbers = #tpu.dot_dimension_numbers<[1], [0], [0], [1], [0, 0, 1, 1], [], []>} : vector<2x32xf32>, vector<32x96xf32>, vector<2x96xf32> -> vector<2x96xf32>
    %255 = vector.broadcast %7 : vector<1x96xf32> to vector<2x96xf32>
    %256 = arith.addf %254, %255 : vector<2x96xf32>
    %257 = vector.extract_strided_slice %252 {offsets = [0, 0], sizes = [2, 32], strides = [1, 1]} : vector<2x96xf32> to vector<2x32xf32>
    %258 = vector.extract_strided_slice %256 {offsets = [0, 0], sizes = [2, 32], strides = [1, 1]} : vector<2x96xf32> to vector<2x32xf32>
    %259 = arith.addf %257, %258 : vector<2x32xf32>
    %260 = arith.negf %259 : vector<2x32xf32>
    %261 = math.exp %260 : vector<2x32xf32>
    %cst_48 = arith.constant 1.000000e+00 : f32
    %262 = vector.broadcast %cst_48 : f32 to vector<2x32xf32>
    %263 = arith.addf %262, %261 : vector<2x32xf32>
    %264 = arith.divf %262, %263 : vector<2x32xf32>
    %265 = vector.extract_strided_slice %252 {offsets = [0, 32], sizes = [2, 32], strides = [1, 1]} : vector<2x96xf32> to vector<2x32xf32>
    %266 = vector.extract_strided_slice %256 {offsets = [0, 32], sizes = [2, 32], strides = [1, 1]} : vector<2x96xf32> to vector<2x32xf32>
    %267 = arith.addf %265, %266 : vector<2x32xf32>
    %268 = arith.negf %267 : vector<2x32xf32>
    %269 = math.exp %268 : vector<2x32xf32>
    %cst_49 = arith.constant 1.000000e+00 : f32
    %270 = vector.broadcast %cst_49 : f32 to vector<2x32xf32>
    %271 = arith.addf %270, %269 : vector<2x32xf32>
    %272 = arith.divf %270, %271 : vector<2x32xf32>
    %273 = vector.extract_strided_slice %252 {offsets = [0, 64], sizes = [2, 32], strides = [1, 1]} : vector<2x96xf32> to vector<2x32xf32>
    %274 = vector.extract_strided_slice %256 {offsets = [0, 64], sizes = [2, 32], strides = [1, 1]} : vector<2x96xf32> to vector<2x32xf32>
    %275 = arith.mulf %264, %274 : vector<2x32xf32>
    %276 = arith.addf %273, %275 : vector<2x32xf32>
    %277 = math.tanh %276 : vector<2x32xf32>
    %cst_50 = arith.constant 1.000000e+00 : f32
    %278 = vector.broadcast %cst_50 : f32 to vector<2x32xf32>
    %279 = arith.subf %278, %272 : vector<2x32xf32>
    %280 = arith.mulf %279, %277 : vector<2x32xf32>
    %281 = arith.mulf %272, %222 : vector<2x32xf32>
    %282 = arith.addf %280, %281 : vector<2x32xf32>
    %cst_51 = arith.constant dense<0.000000e+00> : vector<2x96xf32>
    %283 = tpu.matmul %251, %8, %cst_51 {dimension_numbers = #tpu.dot_dimension_numbers<[1], [0], [0], [1], [0, 0, 1, 1], [], []>} : vector<2x32xf32>, vector<32x96xf32>, vector<2x96xf32> -> vector<2x96xf32>
    %284 = vector.broadcast %9 : vector<1x96xf32> to vector<2x96xf32>
    %285 = arith.addf %283, %284 : vector<2x96xf32>
    %286 = vector.extract_strided_slice %253 {offsets = [0, 0], sizes = [2, 32], strides = [1, 1]} : vector<2x96xf32> to vector<2x32xf32>
    %287 = vector.extract_strided_slice %285 {offsets = [0, 0], sizes = [2, 32], strides = [1, 1]} : vector<2x96xf32> to vector<2x32xf32>
    %288 = arith.addf %286, %287 : vector<2x32xf32>
    %289 = arith.negf %288 : vector<2x32xf32>
    %290 = math.exp %289 : vector<2x32xf32>
    %cst_52 = arith.constant 1.000000e+00 : f32
    %291 = vector.broadcast %cst_52 : f32 to vector<2x32xf32>
    %292 = arith.addf %291, %290 : vector<2x32xf32>
    %293 = arith.divf %291, %292 : vector<2x32xf32>
    %294 = vector.extract_strided_slice %253 {offsets = [0, 32], sizes = [2, 32], strides = [1, 1]} : vector<2x96xf32> to vector<2x32xf32>
    %295 = vector.extract_strided_slice %285 {offsets = [0, 32], sizes = [2, 32], strides = [1, 1]} : vector<2x96xf32> to vector<2x32xf32>
    %296 = arith.addf %294, %295 : vector<2x32xf32>
    %297 = arith.negf %296 : vector<2x32xf32>
    %298 = math.exp %297 : vector<2x32xf32>
    %cst_53 = arith.constant 1.000000e+00 : f32
    %299 = vector.broadcast %cst_53 : f32 to vector<2x32xf32>
    %300 = arith.addf %299, %298 : vector<2x32xf32>
    %301 = arith.divf %299, %300 : vector<2x32xf32>
    %302 = vector.extract_strided_slice %253 {offsets = [0, 64], sizes = [2, 32], strides = [1, 1]} : vector<2x96xf32> to vector<2x32xf32>
    %303 = vector.extract_strided_slice %285 {offsets = [0, 64], sizes = [2, 32], strides = [1, 1]} : vector<2x96xf32> to vector<2x32xf32>
    %304 = arith.mulf %293, %303 : vector<2x32xf32>
    %305 = arith.addf %302, %304 : vector<2x32xf32>
    %306 = math.tanh %305 : vector<2x32xf32>
    %cst_54 = arith.constant 1.000000e+00 : f32
    %307 = vector.broadcast %cst_54 : f32 to vector<2x32xf32>
    %308 = arith.subf %307, %301 : vector<2x32xf32>
    %309 = arith.mulf %308, %306 : vector<2x32xf32>
    %310 = arith.mulf %301, %251 : vector<2x32xf32>
    %311 = arith.addf %309, %310 : vector<2x32xf32>
    %312 = vector.extract_strided_slice %5 {offsets = [10, 0], sizes = [2, 96], strides = [1, 1]} : vector<16x192xf32> to vector<2x96xf32>
    %313 = vector.extract_strided_slice %5 {offsets = [4, 96], sizes = [2, 96], strides = [1, 1]} : vector<16x192xf32> to vector<2x96xf32>
    %cst_55 = arith.constant dense<0.000000e+00> : vector<2x96xf32>
    %314 = tpu.matmul %282, %6, %cst_55 {dimension_numbers = #tpu.dot_dimension_numbers<[1], [0], [0], [1], [0, 0, 1, 1], [], []>} : vector<2x32xf32>, vector<32x96xf32>, vector<2x96xf32> -> vector<2x96xf32>
    %315 = vector.broadcast %7 : vector<1x96xf32> to vector<2x96xf32>
    %316 = arith.addf %314, %315 : vector<2x96xf32>
    %317 = vector.extract_strided_slice %312 {offsets = [0, 0], sizes = [2, 32], strides = [1, 1]} : vector<2x96xf32> to vector<2x32xf32>
    %318 = vector.extract_strided_slice %316 {offsets = [0, 0], sizes = [2, 32], strides = [1, 1]} : vector<2x96xf32> to vector<2x32xf32>
    %319 = arith.addf %317, %318 : vector<2x32xf32>
    %320 = arith.negf %319 : vector<2x32xf32>
    %321 = math.exp %320 : vector<2x32xf32>
    %cst_56 = arith.constant 1.000000e+00 : f32
    %322 = vector.broadcast %cst_56 : f32 to vector<2x32xf32>
    %323 = arith.addf %322, %321 : vector<2x32xf32>
    %324 = arith.divf %322, %323 : vector<2x32xf32>
    %325 = vector.extract_strided_slice %312 {offsets = [0, 32], sizes = [2, 32], strides = [1, 1]} : vector<2x96xf32> to vector<2x32xf32>
    %326 = vector.extract_strided_slice %316 {offsets = [0, 32], sizes = [2, 32], strides = [1, 1]} : vector<2x96xf32> to vector<2x32xf32>
    %327 = arith.addf %325, %326 : vector<2x32xf32>
    %328 = arith.negf %327 : vector<2x32xf32>
    %329 = math.exp %328 : vector<2x32xf32>
    %cst_57 = arith.constant 1.000000e+00 : f32
    %330 = vector.broadcast %cst_57 : f32 to vector<2x32xf32>
    %331 = arith.addf %330, %329 : vector<2x32xf32>
    %332 = arith.divf %330, %331 : vector<2x32xf32>
    %333 = vector.extract_strided_slice %312 {offsets = [0, 64], sizes = [2, 32], strides = [1, 1]} : vector<2x96xf32> to vector<2x32xf32>
    %334 = vector.extract_strided_slice %316 {offsets = [0, 64], sizes = [2, 32], strides = [1, 1]} : vector<2x96xf32> to vector<2x32xf32>
    %335 = arith.mulf %324, %334 : vector<2x32xf32>
    %336 = arith.addf %333, %335 : vector<2x32xf32>
    %337 = math.tanh %336 : vector<2x32xf32>
    %cst_58 = arith.constant 1.000000e+00 : f32
    %338 = vector.broadcast %cst_58 : f32 to vector<2x32xf32>
    %339 = arith.subf %338, %332 : vector<2x32xf32>
    %340 = arith.mulf %339, %337 : vector<2x32xf32>
    %341 = arith.mulf %332, %282 : vector<2x32xf32>
    %342 = arith.addf %340, %341 : vector<2x32xf32>
    %cst_59 = arith.constant dense<0.000000e+00> : vector<2x96xf32>
    %343 = tpu.matmul %311, %8, %cst_59 {dimension_numbers = #tpu.dot_dimension_numbers<[1], [0], [0], [1], [0, 0, 1, 1], [], []>} : vector<2x32xf32>, vector<32x96xf32>, vector<2x96xf32> -> vector<2x96xf32>
    %344 = vector.broadcast %9 : vector<1x96xf32> to vector<2x96xf32>
    %345 = arith.addf %343, %344 : vector<2x96xf32>
    %346 = vector.extract_strided_slice %313 {offsets = [0, 0], sizes = [2, 32], strides = [1, 1]} : vector<2x96xf32> to vector<2x32xf32>
    %347 = vector.extract_strided_slice %345 {offsets = [0, 0], sizes = [2, 32], strides = [1, 1]} : vector<2x96xf32> to vector<2x32xf32>
    %348 = arith.addf %346, %347 : vector<2x32xf32>
    %349 = arith.negf %348 : vector<2x32xf32>
    %350 = math.exp %349 : vector<2x32xf32>
    %cst_60 = arith.constant 1.000000e+00 : f32
    %351 = vector.broadcast %cst_60 : f32 to vector<2x32xf32>
    %352 = arith.addf %351, %350 : vector<2x32xf32>
    %353 = arith.divf %351, %352 : vector<2x32xf32>
    %354 = vector.extract_strided_slice %313 {offsets = [0, 32], sizes = [2, 32], strides = [1, 1]} : vector<2x96xf32> to vector<2x32xf32>
    %355 = vector.extract_strided_slice %345 {offsets = [0, 32], sizes = [2, 32], strides = [1, 1]} : vector<2x96xf32> to vector<2x32xf32>
    %356 = arith.addf %354, %355 : vector<2x32xf32>
    %357 = arith.negf %356 : vector<2x32xf32>
    %358 = math.exp %357 : vector<2x32xf32>
    %cst_61 = arith.constant 1.000000e+00 : f32
    %359 = vector.broadcast %cst_61 : f32 to vector<2x32xf32>
    %360 = arith.addf %359, %358 : vector<2x32xf32>
    %361 = arith.divf %359, %360 : vector<2x32xf32>
    %362 = vector.extract_strided_slice %313 {offsets = [0, 64], sizes = [2, 32], strides = [1, 1]} : vector<2x96xf32> to vector<2x32xf32>
    %363 = vector.extract_strided_slice %345 {offsets = [0, 64], sizes = [2, 32], strides = [1, 1]} : vector<2x96xf32> to vector<2x32xf32>
    %364 = arith.mulf %353, %363 : vector<2x32xf32>
    %365 = arith.addf %362, %364 : vector<2x32xf32>
    %366 = math.tanh %365 : vector<2x32xf32>
    %cst_62 = arith.constant 1.000000e+00 : f32
    %367 = vector.broadcast %cst_62 : f32 to vector<2x32xf32>
    %368 = arith.subf %367, %361 : vector<2x32xf32>
    %369 = arith.mulf %368, %366 : vector<2x32xf32>
    %370 = arith.mulf %361, %311 : vector<2x32xf32>
    %371 = arith.addf %369, %370 : vector<2x32xf32>
    %372 = vector.extract_strided_slice %5 {offsets = [12, 0], sizes = [2, 96], strides = [1, 1]} : vector<16x192xf32> to vector<2x96xf32>
    %373 = vector.extract_strided_slice %5 {offsets = [2, 96], sizes = [2, 96], strides = [1, 1]} : vector<16x192xf32> to vector<2x96xf32>
    %cst_63 = arith.constant dense<0.000000e+00> : vector<2x96xf32>
    %374 = tpu.matmul %342, %6, %cst_63 {dimension_numbers = #tpu.dot_dimension_numbers<[1], [0], [0], [1], [0, 0, 1, 1], [], []>} : vector<2x32xf32>, vector<32x96xf32>, vector<2x96xf32> -> vector<2x96xf32>
    %375 = vector.broadcast %7 : vector<1x96xf32> to vector<2x96xf32>
    %376 = arith.addf %374, %375 : vector<2x96xf32>
    %377 = vector.extract_strided_slice %372 {offsets = [0, 0], sizes = [2, 32], strides = [1, 1]} : vector<2x96xf32> to vector<2x32xf32>
    %378 = vector.extract_strided_slice %376 {offsets = [0, 0], sizes = [2, 32], strides = [1, 1]} : vector<2x96xf32> to vector<2x32xf32>
    %379 = arith.addf %377, %378 : vector<2x32xf32>
    %380 = arith.negf %379 : vector<2x32xf32>
    %381 = math.exp %380 : vector<2x32xf32>
    %cst_64 = arith.constant 1.000000e+00 : f32
    %382 = vector.broadcast %cst_64 : f32 to vector<2x32xf32>
    %383 = arith.addf %382, %381 : vector<2x32xf32>
    %384 = arith.divf %382, %383 : vector<2x32xf32>
    %385 = vector.extract_strided_slice %372 {offsets = [0, 32], sizes = [2, 32], strides = [1, 1]} : vector<2x96xf32> to vector<2x32xf32>
    %386 = vector.extract_strided_slice %376 {offsets = [0, 32], sizes = [2, 32], strides = [1, 1]} : vector<2x96xf32> to vector<2x32xf32>
    %387 = arith.addf %385, %386 : vector<2x32xf32>
    %388 = arith.negf %387 : vector<2x32xf32>
    %389 = math.exp %388 : vector<2x32xf32>
    %cst_65 = arith.constant 1.000000e+00 : f32
    %390 = vector.broadcast %cst_65 : f32 to vector<2x32xf32>
    %391 = arith.addf %390, %389 : vector<2x32xf32>
    %392 = arith.divf %390, %391 : vector<2x32xf32>
    %393 = vector.extract_strided_slice %372 {offsets = [0, 64], sizes = [2, 32], strides = [1, 1]} : vector<2x96xf32> to vector<2x32xf32>
    %394 = vector.extract_strided_slice %376 {offsets = [0, 64], sizes = [2, 32], strides = [1, 1]} : vector<2x96xf32> to vector<2x32xf32>
    %395 = arith.mulf %384, %394 : vector<2x32xf32>
    %396 = arith.addf %393, %395 : vector<2x32xf32>
    %397 = math.tanh %396 : vector<2x32xf32>
    %cst_66 = arith.constant 1.000000e+00 : f32
    %398 = vector.broadcast %cst_66 : f32 to vector<2x32xf32>
    %399 = arith.subf %398, %392 : vector<2x32xf32>
    %400 = arith.mulf %399, %397 : vector<2x32xf32>
    %401 = arith.mulf %392, %342 : vector<2x32xf32>
    %402 = arith.addf %400, %401 : vector<2x32xf32>
    %cst_67 = arith.constant dense<0.000000e+00> : vector<2x96xf32>
    %403 = tpu.matmul %371, %8, %cst_67 {dimension_numbers = #tpu.dot_dimension_numbers<[1], [0], [0], [1], [0, 0, 1, 1], [], []>} : vector<2x32xf32>, vector<32x96xf32>, vector<2x96xf32> -> vector<2x96xf32>
    %404 = vector.broadcast %9 : vector<1x96xf32> to vector<2x96xf32>
    %405 = arith.addf %403, %404 : vector<2x96xf32>
    %406 = vector.extract_strided_slice %373 {offsets = [0, 0], sizes = [2, 32], strides = [1, 1]} : vector<2x96xf32> to vector<2x32xf32>
    %407 = vector.extract_strided_slice %405 {offsets = [0, 0], sizes = [2, 32], strides = [1, 1]} : vector<2x96xf32> to vector<2x32xf32>
    %408 = arith.addf %406, %407 : vector<2x32xf32>
    %409 = arith.negf %408 : vector<2x32xf32>
    %410 = math.exp %409 : vector<2x32xf32>
    %cst_68 = arith.constant 1.000000e+00 : f32
    %411 = vector.broadcast %cst_68 : f32 to vector<2x32xf32>
    %412 = arith.addf %411, %410 : vector<2x32xf32>
    %413 = arith.divf %411, %412 : vector<2x32xf32>
    %414 = vector.extract_strided_slice %373 {offsets = [0, 32], sizes = [2, 32], strides = [1, 1]} : vector<2x96xf32> to vector<2x32xf32>
    %415 = vector.extract_strided_slice %405 {offsets = [0, 32], sizes = [2, 32], strides = [1, 1]} : vector<2x96xf32> to vector<2x32xf32>
    %416 = arith.addf %414, %415 : vector<2x32xf32>
    %417 = arith.negf %416 : vector<2x32xf32>
    %418 = math.exp %417 : vector<2x32xf32>
    %cst_69 = arith.constant 1.000000e+00 : f32
    %419 = vector.broadcast %cst_69 : f32 to vector<2x32xf32>
    %420 = arith.addf %419, %418 : vector<2x32xf32>
    %421 = arith.divf %419, %420 : vector<2x32xf32>
    %422 = vector.extract_strided_slice %373 {offsets = [0, 64], sizes = [2, 32], strides = [1, 1]} : vector<2x96xf32> to vector<2x32xf32>
    %423 = vector.extract_strided_slice %405 {offsets = [0, 64], sizes = [2, 32], strides = [1, 1]} : vector<2x96xf32> to vector<2x32xf32>
    %424 = arith.mulf %413, %423 : vector<2x32xf32>
    %425 = arith.addf %422, %424 : vector<2x32xf32>
    %426 = math.tanh %425 : vector<2x32xf32>
    %cst_70 = arith.constant 1.000000e+00 : f32
    %427 = vector.broadcast %cst_70 : f32 to vector<2x32xf32>
    %428 = arith.subf %427, %421 : vector<2x32xf32>
    %429 = arith.mulf %428, %426 : vector<2x32xf32>
    %430 = arith.mulf %421, %371 : vector<2x32xf32>
    %431 = arith.addf %429, %430 : vector<2x32xf32>
    %432 = vector.extract_strided_slice %5 {offsets = [14, 0], sizes = [2, 96], strides = [1, 1]} : vector<16x192xf32> to vector<2x96xf32>
    %433 = vector.extract_strided_slice %5 {offsets = [0, 96], sizes = [2, 96], strides = [1, 1]} : vector<16x192xf32> to vector<2x96xf32>
    %cst_71 = arith.constant dense<0.000000e+00> : vector<2x96xf32>
    %434 = tpu.matmul %402, %6, %cst_71 {dimension_numbers = #tpu.dot_dimension_numbers<[1], [0], [0], [1], [0, 0, 1, 1], [], []>} : vector<2x32xf32>, vector<32x96xf32>, vector<2x96xf32> -> vector<2x96xf32>
    %435 = vector.broadcast %7 : vector<1x96xf32> to vector<2x96xf32>
    %436 = arith.addf %434, %435 : vector<2x96xf32>
    %437 = vector.extract_strided_slice %432 {offsets = [0, 0], sizes = [2, 32], strides = [1, 1]} : vector<2x96xf32> to vector<2x32xf32>
    %438 = vector.extract_strided_slice %436 {offsets = [0, 0], sizes = [2, 32], strides = [1, 1]} : vector<2x96xf32> to vector<2x32xf32>
    %439 = arith.addf %437, %438 : vector<2x32xf32>
    %440 = arith.negf %439 : vector<2x32xf32>
    %441 = math.exp %440 : vector<2x32xf32>
    %cst_72 = arith.constant 1.000000e+00 : f32
    %442 = vector.broadcast %cst_72 : f32 to vector<2x32xf32>
    %443 = arith.addf %442, %441 : vector<2x32xf32>
    %444 = arith.divf %442, %443 : vector<2x32xf32>
    %445 = vector.extract_strided_slice %432 {offsets = [0, 32], sizes = [2, 32], strides = [1, 1]} : vector<2x96xf32> to vector<2x32xf32>
    %446 = vector.extract_strided_slice %436 {offsets = [0, 32], sizes = [2, 32], strides = [1, 1]} : vector<2x96xf32> to vector<2x32xf32>
    %447 = arith.addf %445, %446 : vector<2x32xf32>
    %448 = arith.negf %447 : vector<2x32xf32>
    %449 = math.exp %448 : vector<2x32xf32>
    %cst_73 = arith.constant 1.000000e+00 : f32
    %450 = vector.broadcast %cst_73 : f32 to vector<2x32xf32>
    %451 = arith.addf %450, %449 : vector<2x32xf32>
    %452 = arith.divf %450, %451 : vector<2x32xf32>
    %453 = vector.extract_strided_slice %432 {offsets = [0, 64], sizes = [2, 32], strides = [1, 1]} : vector<2x96xf32> to vector<2x32xf32>
    %454 = vector.extract_strided_slice %436 {offsets = [0, 64], sizes = [2, 32], strides = [1, 1]} : vector<2x96xf32> to vector<2x32xf32>
    %455 = arith.mulf %444, %454 : vector<2x32xf32>
    %456 = arith.addf %453, %455 : vector<2x32xf32>
    %457 = math.tanh %456 : vector<2x32xf32>
    %cst_74 = arith.constant 1.000000e+00 : f32
    %458 = vector.broadcast %cst_74 : f32 to vector<2x32xf32>
    %459 = arith.subf %458, %452 : vector<2x32xf32>
    %460 = arith.mulf %459, %457 : vector<2x32xf32>
    %461 = arith.mulf %452, %402 : vector<2x32xf32>
    %462 = arith.addf %460, %461 : vector<2x32xf32>
    %cst_75 = arith.constant dense<0.000000e+00> : vector<2x96xf32>
    %463 = tpu.matmul %431, %8, %cst_75 {dimension_numbers = #tpu.dot_dimension_numbers<[1], [0], [0], [1], [0, 0, 1, 1], [], []>} : vector<2x32xf32>, vector<32x96xf32>, vector<2x96xf32> -> vector<2x96xf32>
    %464 = vector.broadcast %9 : vector<1x96xf32> to vector<2x96xf32>
    %465 = arith.addf %463, %464 : vector<2x96xf32>
    %466 = vector.extract_strided_slice %433 {offsets = [0, 0], sizes = [2, 32], strides = [1, 1]} : vector<2x96xf32> to vector<2x32xf32>
    %467 = vector.extract_strided_slice %465 {offsets = [0, 0], sizes = [2, 32], strides = [1, 1]} : vector<2x96xf32> to vector<2x32xf32>
    %468 = arith.addf %466, %467 : vector<2x32xf32>
    %469 = arith.negf %468 : vector<2x32xf32>
    %470 = math.exp %469 : vector<2x32xf32>
    %cst_76 = arith.constant 1.000000e+00 : f32
    %471 = vector.broadcast %cst_76 : f32 to vector<2x32xf32>
    %472 = arith.addf %471, %470 : vector<2x32xf32>
    %473 = arith.divf %471, %472 : vector<2x32xf32>
    %474 = vector.extract_strided_slice %433 {offsets = [0, 32], sizes = [2, 32], strides = [1, 1]} : vector<2x96xf32> to vector<2x32xf32>
    %475 = vector.extract_strided_slice %465 {offsets = [0, 32], sizes = [2, 32], strides = [1, 1]} : vector<2x96xf32> to vector<2x32xf32>
    %476 = arith.addf %474, %475 : vector<2x32xf32>
    %477 = arith.negf %476 : vector<2x32xf32>
    %478 = math.exp %477 : vector<2x32xf32>
    %cst_77 = arith.constant 1.000000e+00 : f32
    %479 = vector.broadcast %cst_77 : f32 to vector<2x32xf32>
    %480 = arith.addf %479, %478 : vector<2x32xf32>
    %481 = arith.divf %479, %480 : vector<2x32xf32>
    %482 = vector.extract_strided_slice %433 {offsets = [0, 64], sizes = [2, 32], strides = [1, 1]} : vector<2x96xf32> to vector<2x32xf32>
    %483 = vector.extract_strided_slice %465 {offsets = [0, 64], sizes = [2, 32], strides = [1, 1]} : vector<2x96xf32> to vector<2x32xf32>
    %484 = arith.mulf %473, %483 : vector<2x32xf32>
    %485 = arith.addf %482, %484 : vector<2x32xf32>
    %486 = math.tanh %485 : vector<2x32xf32>
    %cst_78 = arith.constant 1.000000e+00 : f32
    %487 = vector.broadcast %cst_78 : f32 to vector<2x32xf32>
    %488 = arith.subf %487, %481 : vector<2x32xf32>
    %489 = arith.mulf %488, %486 : vector<2x32xf32>
    %490 = arith.mulf %481, %431 : vector<2x32xf32>
    %491 = arith.addf %489, %490 : vector<2x32xf32>
    %492 = tpu.concatenate %462, %491 in 1 : vector<2x32xf32>, vector<2x32xf32> -> vector<2x64xf32>
    %c0_79 = arith.constant 0 : index
    %c0_80 = arith.constant 0 : index
    %493 = vector.load %arg7[%c0_79, %c0_80] : memref<32x64xf32, #tpu.memory_space<vmem>>, vector<32x64xf32>
    %c0_81 = arith.constant 0 : index
    %c0_82 = arith.constant 0 : index
    %494 = vector.load %arg12[%c0_81, %c0_82] : memref<64x64xf32, #tpu.memory_space<vmem>>, vector<64x64xf32>
    %cst_83 = arith.constant dense<0.000000e+00> : vector<32x64xf32>
    %495 = tpu.matmul %493, %494, %cst_83 {dimension_numbers = #tpu.dot_dimension_numbers<[1], [0], [0], [1], [0, 0, 1, 1], [], []>} : vector<32x64xf32>, vector<64x64xf32>, vector<32x64xf32> -> vector<32x64xf32>
    %496 = vector.extract_strided_slice %495 {offsets = [0, 0], sizes = [32, 32], strides = [1, 1]} : vector<32x64xf32> to vector<32x32xf32>
    %497 = vector.shape_cast %496 : vector<32x32xf32> to vector<2x16x32xf32>
    %498 = vector.extract_strided_slice %495 {offsets = [0, 32], sizes = [32, 32], strides = [1, 1]} : vector<32x64xf32> to vector<32x32xf32>
    %499 = vector.shape_cast %498 : vector<32x32xf32> to vector<2x16x32xf32>
    %500 = vector.shape_cast %493 : vector<32x64xf32> to vector<2x16x64xf32>
    %c0_84 = arith.constant 0 : index
    %c0_85 = arith.constant 0 : index
    %501 = vector.load %arg8[%c0_84, %c0_85] : memref<64x32xf32, #tpu.memory_space<vmem>>, vector<64x32xf32>
    %cst_86 = arith.constant dense<0.000000e+00> : vector<2x32xf32>
    %502 = tpu.matmul %492, %501, %cst_86 {dimension_numbers = #tpu.dot_dimension_numbers<[1], [0], [0], [1], [0, 0, 1, 1], [], []>} : vector<2x64xf32>, vector<64x32xf32>, vector<2x32xf32> -> vector<2x32xf32>
    %c0_87 = arith.constant 0 : index
    %c0_88 = arith.constant 0 : index
    %503 = vector.load %arg9[%c0_87, %c0_88] : memref<1x32xf32, #tpu.memory_space<vmem>>, vector<1x32xf32>
    %504 = vector.broadcast %503 : vector<1x32xf32> to vector<2x32xf32>
    %505 = arith.addf %502, %504 : vector<2x32xf32>
    %506 = vector.shape_cast %505 : vector<2x32xf32> to vector<2x1x32xf32>
    %507 = vector.broadcast %506 : vector<2x1x32xf32> to vector<2x16x32xf32>
    %508 = arith.addf %497, %507 : vector<2x16x32xf32>
    %509 = math.tanh %508 : vector<2x16x32xf32>
    %c0_89 = arith.constant 0 : index
    %c0_90 = arith.constant 0 : index
    %510 = vector.load %arg13[%c0_89, %c0_90] : memref<1x32xf32, #tpu.memory_space<vmem>>, vector<1x32xf32>
    %511 = vector.shape_cast %510 : vector<1x32xf32> to vector<1x1x32xf32>
    %512 = vector.broadcast %511 : vector<1x1x32xf32> to vector<2x16x32xf32>
    %513 = arith.mulf %509, %512 : vector<2x16x32xf32>
    %cst_91 = arith.constant dense<0.000000e+00> : vector<2x16xf32>
    %514 = vector.multi_reduction <add>, %513, %cst_91 [2] : vector<2x16x32xf32> to vector<2x16xf32>
    %515 = vector.shape_cast %514 : vector<2x16xf32> to vector<2x16x1xf32>
    %c0_92 = arith.constant 0 : index
    %c0_93 = arith.constant 0 : index
    %516 = vector.load %arg14[%c0_92, %c0_93] : memref<1x1xf32, #tpu.memory_space<vmem>>, vector<1x1xf32>
    %517 = vector.shape_cast %516 : vector<1x1xf32> to vector<1x1x1xf32>
    %518 = vector.broadcast %517 : vector<1x1x1xf32> to vector<2x16x1xf32>
    %519 = arith.addf %515, %518 : vector<2x16x1xf32>
    %cst_94 = arith.constant dense<0xFF800000> : vector<2x1xf32>
    %520 = vector.multi_reduction <maximumf>, %519, %cst_94 [1] : vector<2x16x1xf32> to vector<2x1xf32>
    %521 = vector.shape_cast %520 : vector<2x1xf32> to vector<2x1x1xf32>
    %522 = vector.broadcast %521 : vector<2x1x1xf32> to vector<2x16x1xf32>
    %523 = arith.subf %519, %522 : vector<2x16x1xf32>
    %524 = math.exp %523 : vector<2x16x1xf32>
    %cst_95 = arith.constant dense<0.000000e+00> : vector<2x1xf32>
    %525 = vector.multi_reduction <add>, %524, %cst_95 [1] : vector<2x16x1xf32> to vector<2x1xf32>
    %526 = vector.shape_cast %525 : vector<2x1xf32> to vector<2x1x1xf32>
    %527 = tpu.reciprocal %526 {approx = true} : vector<2x1x1xf32> -> vector<2x1x1xf32>
    %528 = vector.broadcast %527 : vector<2x1x1xf32> to vector<2x16x1xf32>
    %529 = arith.mulf %524, %528 : vector<2x16x1xf32>
    %530 = vector.broadcast %529 : vector<2x16x1xf32> to vector<2x16x64xf32>
    %531 = arith.mulf %500, %530 : vector<2x16x64xf32>
    %cst_96 = arith.constant dense<0.000000e+00> : vector<2x64xf32>
    %532 = vector.multi_reduction <add>, %531, %cst_96 [1] : vector<2x16x64xf32> to vector<2x64xf32>
    %533 = vector.shape_cast %532 : vector<2x64xf32> to vector<2x1x64xf32>
    %534 = vector.shape_cast %533 : vector<2x1x64xf32> to vector<2x64xf32>
    %535 = arith.addf %534, %492 : vector<2x64xf32>
    %c0_97 = arith.constant 0 : index
    %c0_98 = arith.constant 0 : index
    %536 = vector.load %arg10[%c0_97, %c0_98] : memref<64x32xf32, #tpu.memory_space<vmem>>, vector<64x32xf32>
    %cst_99 = arith.constant dense<0.000000e+00> : vector<2x32xf32>
    %537 = tpu.matmul %535, %536, %cst_99 {dimension_numbers = #tpu.dot_dimension_numbers<[1], [0], [0], [1], [0, 0, 1, 1], [], []>} : vector<2x64xf32>, vector<64x32xf32>, vector<2x32xf32> -> vector<2x32xf32>
    %c0_100 = arith.constant 0 : index
    %c0_101 = arith.constant 0 : index
    %538 = vector.load %arg11[%c0_100, %c0_101] : memref<1x32xf32, #tpu.memory_space<vmem>>, vector<1x32xf32>
    %539 = vector.broadcast %538 : vector<1x32xf32> to vector<2x32xf32>
    %540 = arith.addf %537, %539 : vector<2x32xf32>
    %541 = vector.shape_cast %540 : vector<2x32xf32> to vector<2x1x32xf32>
    %542 = vector.broadcast %541 : vector<2x1x32xf32> to vector<2x16x32xf32>
    %543 = arith.addf %499, %542 : vector<2x16x32xf32>
    %544 = math.tanh %543 : vector<2x16x32xf32>
    %c0_102 = arith.constant 0 : index
    %c0_103 = arith.constant 0 : index
    %545 = vector.load %arg15[%c0_102, %c0_103] : memref<1x32xf32, #tpu.memory_space<vmem>>, vector<1x32xf32>
    %546 = vector.shape_cast %545 : vector<1x32xf32> to vector<1x1x32xf32>
    %547 = vector.broadcast %546 : vector<1x1x32xf32> to vector<2x16x32xf32>
    %548 = arith.mulf %544, %547 : vector<2x16x32xf32>
    %cst_104 = arith.constant dense<0.000000e+00> : vector<2x16xf32>
    %549 = vector.multi_reduction <add>, %548, %cst_104 [2] : vector<2x16x32xf32> to vector<2x16xf32>
    %550 = vector.shape_cast %549 : vector<2x16xf32> to vector<2x16x1xf32>
    %c0_105 = arith.constant 0 : index
    %c0_106 = arith.constant 0 : index
    %551 = vector.load %arg16[%c0_105, %c0_106] : memref<1x1xf32, #tpu.memory_space<vmem>>, vector<1x1xf32>
    %552 = vector.shape_cast %551 : vector<1x1xf32> to vector<1x1x1xf32>
    %553 = vector.broadcast %552 : vector<1x1x1xf32> to vector<2x16x1xf32>
    %554 = arith.addf %550, %553 : vector<2x16x1xf32>
    %cst_107 = arith.constant dense<0xFF800000> : vector<2x1xf32>
    %555 = vector.multi_reduction <maximumf>, %554, %cst_107 [1] : vector<2x16x1xf32> to vector<2x1xf32>
    %556 = vector.shape_cast %555 : vector<2x1xf32> to vector<2x1x1xf32>
    %557 = vector.broadcast %556 : vector<2x1x1xf32> to vector<2x16x1xf32>
    %558 = arith.subf %554, %557 : vector<2x16x1xf32>
    %559 = math.exp %558 : vector<2x16x1xf32>
    %cst_108 = arith.constant dense<0.000000e+00> : vector<2x1xf32>
    %560 = vector.multi_reduction <add>, %559, %cst_108 [1] : vector<2x16x1xf32> to vector<2x1xf32>
    %561 = vector.shape_cast %560 : vector<2x1xf32> to vector<2x1x1xf32>
    %562 = tpu.reciprocal %561 {approx = true} : vector<2x1x1xf32> -> vector<2x1x1xf32>
    %563 = vector.broadcast %562 : vector<2x1x1xf32> to vector<2x16x1xf32>
    %564 = arith.mulf %559, %563 : vector<2x16x1xf32>
    %565 = vector.broadcast %564 : vector<2x16x1xf32> to vector<2x16x64xf32>
    %566 = arith.mulf %500, %565 : vector<2x16x64xf32>
    %cst_109 = arith.constant dense<0.000000e+00> : vector<2x64xf32>
    %567 = vector.multi_reduction <add>, %566, %cst_109 [1] : vector<2x16x64xf32> to vector<2x64xf32>
    %568 = vector.shape_cast %567 : vector<2x64xf32> to vector<2x1x64xf32>
    %569 = vector.shape_cast %568 : vector<2x1x64xf32> to vector<2x64xf32>
    %570 = arith.addf %569, %535 : vector<2x64xf32>
    %c0_110 = arith.constant 0 : index
    %c0_111 = arith.constant 0 : index
    %571 = vector.load %arg17[%c0_110, %c0_111] : memref<64x16xf32, #tpu.memory_space<vmem>>, vector<64x16xf32>
    %cst_112 = arith.constant dense<0.000000e+00> : vector<2x16xf32>
    %572 = tpu.matmul %570, %571, %cst_112 {dimension_numbers = #tpu.dot_dimension_numbers<[1], [0], [0], [1], [0, 0, 1, 1], [], []>} : vector<2x64xf32>, vector<64x16xf32>, vector<2x16xf32> -> vector<2x16xf32>
    %c0_113 = arith.constant 0 : index
    %c0_114 = arith.constant 0 : index
    %573 = vector.load %arg18[%c0_113, %c0_114] : memref<1x16xf32, #tpu.memory_space<vmem>>, vector<1x16xf32>
    %574 = vector.broadcast %573 : vector<1x16xf32> to vector<2x16xf32>
    %575 = arith.addf %572, %574 : vector<2x16xf32>
    %cst_115 = arith.constant dense<0xFF800000> : vector<2xf32>
    %576 = vector.multi_reduction <maximumf>, %575, %cst_115 [1] : vector<2x16xf32> to vector<2xf32>
    %577 = vector.shape_cast %576 : vector<2xf32> to vector<2x1xf32>
    %578 = vector.broadcast %577 : vector<2x1xf32> to vector<2x16xf32>
    %579 = arith.subf %575, %578 : vector<2x16xf32>
    %580 = math.exp %579 : vector<2x16xf32>
    %cst_116 = arith.constant dense<0.000000e+00> : vector<2xf32>
    %581 = vector.multi_reduction <add>, %580, %cst_116 [1] : vector<2x16xf32> to vector<2xf32>
    %582 = vector.shape_cast %581 : vector<2xf32> to vector<2x1xf32>
    %583 = math.log %582 : vector<2x1xf32>
    %584 = vector.broadcast %583 : vector<2x1xf32> to vector<2x16xf32>
    %585 = arith.subf %579, %584 : vector<2x16xf32>
    %c0_117 = arith.constant 0 : index
    %c0_118 = arith.constant 0 : index
    %586 = vector.load %arg19[%c0_117, %c0_118] : memref<2x16xf32, #tpu.memory_space<vmem>>, vector<2x16xf32>
    tpu.vector_store %arg19[%c0_117, %c0_118], %585 {strides = array<i32>} : memref<2x16xf32, #tpu.memory_space<vmem>>, vector<2x16xf32>,
    return
  }
}

</mosaic_0001>

<llo_original>
// kernel: tpu_custom_call.1
$region0: #{tpu_custom_call.1}
  #allocation0 [shape = 'u32[]', space=smem, size = 0x4, offset = 0x4, fixed_abs, tag = 'smem constant byte address 0x4 - core index']
  #allocation1 [shape = 'u32[72,128]{1,0:T(1,128)}', space=vmem, size = 0x9000, scoped, tag = 'internal scratch']
  #allocation2 [shape = 'f32[1,1]{1,0:T(1,128)S(1)}', space=vmem, size = 0x200, scoped, tag = 'scoped memory for tpu_custom_call.1']
  #allocation3 [shape = 'f32[1,1]{1,0:T(1,128)S(1)}', space=vmem, size = 0x200, scoped, tag = 'scoped memory for tpu_custom_call.1']
  %s0 = inlined_call_operand.hbm [shape: f32[16,32], index: 0, kind: input, shape index: {}]
  %s1 = inlined_call_operand.vmem [shape: f32[32,192], index: 1, kind: input, shape index: {}]
  %s2 = inlined_call_operand.vmem [shape: f32[1,192], index: 2, kind: input, shape index: {}]
  %s3 = inlined_call_operand.vmem [shape: f32[32,96], index: 3, kind: input, shape index: {}]
  %s4 = inlined_call_operand.vmem [shape: f32[1,96], index: 4, kind: input, shape index: {}]
  %s5 = inlined_call_operand.vmem [shape: f32[32,96], index: 5, kind: input, shape index: {}]
  %s6 = inlined_call_operand.vmem [shape: f32[1,96], index: 6, kind: input, shape index: {}]
  %s7 = inlined_call_operand.vmem [shape: f32[32,64], index: 7, kind: input, shape index: {}]
  %s8 = inlined_call_operand.vmem [shape: f32[64,32], index: 8, kind: input, shape index: {}]
  %s9 = inlined_call_operand.vmem [shape: f32[1,32], index: 9, kind: input, shape index: {}]
  %s10 = inlined_call_operand.vmem [shape: f32[64,32], index: 10, kind: input, shape index: {}]
  %s11 = inlined_call_operand.vmem [shape: f32[1,32], index: 11, kind: input, shape index: {}]
  %s12 = inlined_call_operand.vmem [shape: f32[64,64], index: 12, kind: input, shape index: {}]
  %s13 = inlined_call_operand.vmem [shape: f32[1,32], index: 13, kind: input, shape index: {}]
  %s14 = inlined_call_operand.<no memory space> [shape: f32[1,1], index: 14, kind: input, shape index: {}]
  %s15 = inlined_call_operand.vmem [shape: f32[1,32], index: 15, kind: input, shape index: {}]
  %s16 = inlined_call_operand.<no memory space> [shape: f32[1,1], index: 16, kind: input, shape index: {}]
  %s17 = inlined_call_operand.vmem [shape: f32[64,16], index: 17, kind: input, shape index: {}]
  %s18 = inlined_call_operand.vmem [shape: f32[1,16], index: 18, kind: input, shape index: {}]
  %s19 = inlined_call_operand.hbm [shape: f32[2,16], index: 19, kind: output, shape index: {}]
  %s20 = sld [smem:[#allocation0]]
  $region90: #{tpu_custom_call.1} parent=0
    _
  %s22 = ssub.s32 1, %s20
  %s23 = scalar_select 0, %s22, %s20
  %v24 = vstv %s14
  %25 = vst [vmem:[#allocation2] sm:$0x1] %v24
  %v26 = vstv %s16
  %27 = vst [vmem:[#allocation3] sm:$0x1] %v26
  $region1: #{tpu_custom_call.1} parent=0
    #allocation4 [shape = 'u8[8192]{0}', space=vmem, size = 0x2000, scoped, tag = 'input window, operand 0, single buffered']
    #allocation5 [shape = 's32[1]{0}', space=sflag, size = 0x4, scoped, tag = 'scoped memory for tpu_custom_call.1']
    #allocation6 [shape = 's32[1]{0}', space=sflag, size = 0x4, scoped, tag = 'scoped memory for tpu_custom_call.1']
    #allocation7 [shape = 'u8[1024]{0}', space=vmem, size = 0x400, scoped, tag = 'output window, operand 0, single buffered']
    %28 = vsyncpa [#allocation5], 0
    %29 = vsyncpa [#allocation6], 0
    // Predicated region
    $region2: #{tpu_custom_call.1} parent=1 // pred_check
      _
    $region3: #{tpu_custom_call.1} parent=1 // pred_check_branch
      %31 = sbr.rel (0) target = $region5
    $region4: #{tpu_custom_call.1} parent=1 // pred_region
      %33 = vsyncadd [#allocation5], 0
      %s34 = sshll.u32 %s0, 4
      %s35 = int_to_ptr.hbm [resolvable:$true] %s34
      %s36 = sshll.u32 [#allocation4], 4
      %s37 = int_to_ptr.vmem [resolvable:$true] %s36
      %42 = dma.hbm_to_vmem [thread:$0]  %s35, 256, %s37, [#allocation5], 128, 128, 8
    $region5: #{tpu_custom_call.1} parent=1 // pred_fallthru
      _
    // Predicated region
    $region6: #{tpu_custom_call.1} parent=1 // pred_check
      _
    $region7: #{tpu_custom_call.1} parent=1 // pred_check_branch
      %44 = sbr.rel (0) target = $region9
    $region8: #{tpu_custom_call.1} parent=1 // pred_region
      _
    $region9: #{tpu_custom_call.1} parent=1 // pred_fallthru
      _
    // Predicated region
    $region10: #{tpu_custom_call.1} parent=1 // pred_check
      _
    $region11: #{tpu_custom_call.1} parent=1 // pred_check_branch
      %46 = sbr.rel (0) target = $region13
    $region12: #{tpu_custom_call.1} parent=1 // pred_region
      _
    $region13: #{tpu_custom_call.1} parent=1 // pred_fallthru
      _
    // Predicated region
    $region14: #{tpu_custom_call.1} parent=1 // pred_check
      _
    $region15: #{tpu_custom_call.1} parent=1 // pred_check_branch
      %48 = sbr.rel (0) target = $region17
    $region16: #{tpu_custom_call.1} parent=1 // pred_region
      _
    $region17: #{tpu_custom_call.1} parent=1 // pred_fallthru
      _
    // Predicated region
    $region18: #{tpu_custom_call.1} parent=1 // pred_check
      _
    $region19: #{tpu_custom_call.1} parent=1 // pred_check_branch
      %50 = sbr.rel (0) target = $region21
    $region20: #{tpu_custom_call.1} parent=1 // pred_region
      _
    $region21: #{tpu_custom_call.1} parent=1 // pred_fallthru
      _
    // Predicated region
    $region22: #{tpu_custom_call.1} parent=1 // pred_check
      _
    $region23: #{tpu_custom_call.1} parent=1 // pred_check_branch
      %52 = sbr.rel (0) target = $region25
    $region24: #{tpu_custom_call.1} parent=1 // pred_region
      _
    $region25: #{tpu_custom_call.1} parent=1 // pred_fallthru
      _
    // Predicated region
    $region26: #{tpu_custom_call.1} parent=1 // pred_check
      _
    $region27: #{tpu_custom_call.1} parent=1 // pred_check_branch
      %54 = sbr.rel (0) target = $region29
    $region28: #{tpu_custom_call.1} parent=1 // pred_region
      _
    $region29: #{tpu_custom_call.1} parent=1 // pred_fallthru
      _
    // Predicated region
    $region30: #{tpu_custom_call.1} parent=1 // pred_check
      _
    $region31: #{tpu_custom_call.1} parent=1 // pred_check_branch
      %56 = sbr.rel (0) target = $region33
    $region32: #{tpu_custom_call.1} parent=1 // pred_region
      _
    $region33: #{tpu_custom_call.1} parent=1 // pred_fallthru
      _
    // Predicated region
    $region34: #{tpu_custom_call.1} parent=1 // pred_check
      _
    $region35: #{tpu_custom_call.1} parent=1 // pred_check_branch
      %58 = sbr.rel (0) target = $region37
    $region36: #{tpu_custom_call.1} parent=1 // pred_region
      _
    $region37: #{tpu_custom_call.1} parent=1 // pred_fallthru
      _
    // Predicated region
    $region38: #{tpu_custom_call.1} parent=1 // pred_check
      _
    $region39: #{tpu_custom_call.1} parent=1 // pred_check_branch
      %60 = sbr.rel (0) target = $region41
    $region40: #{tpu_custom_call.1} parent=1 // pred_region
      _
    $region41: #{tpu_custom_call.1} parent=1 // pred_fallthru
      _
    // Predicated region
    $region42: #{tpu_custom_call.1} parent=1 // pred_check
      _
    $region43: #{tpu_custom_call.1} parent=1 // pred_check_branch
      %62 = sbr.rel (0) target = $region45
    $region44: #{tpu_custom_call.1} parent=1 // pred_region
      _
    $region45: #{tpu_custom_call.1} parent=1 // pred_fallthru
      _
    // Predicated region
    $region46: #{tpu_custom_call.1} parent=1 // pred_check
      _
    $region47: #{tpu_custom_call.1} parent=1 // pred_check_branch
      %64 = sbr.rel (0) target = $region49
    $region48: #{tpu_custom_call.1} parent=1 // pred_region
      _
    $region49: #{tpu_custom_call.1} parent=1 // pred_fallthru
      _
    // Predicated region
    $region50: #{tpu_custom_call.1} parent=1 // pred_check
      _
    $region51: #{tpu_custom_call.1} parent=1 // pred_check_branch
      %66 = sbr.rel (0) target = $region53
    $region52: #{tpu_custom_call.1} parent=1 // pred_region
      _
    $region53: #{tpu_custom_call.1} parent=1 // pred_fallthru
      _
    // Predicated region
    $region54: #{tpu_custom_call.1} parent=1 // pred_check
      _
    $region55: #{tpu_custom_call.1} parent=1 // pred_check_branch
      %68 = sbr.rel (0) target = $region57
    $region56: #{tpu_custom_call.1} parent=1 // pred_region
      _
    $region57: #{tpu_custom_call.1} parent=1 // pred_fallthru
      _
    // Predicated region
    $region58: #{tpu_custom_call.1} parent=1 // pred_check
      _
    $region59: #{tpu_custom_call.1} parent=1 // pred_check_branch
      %70 = sbr.rel (0) target = $region61
    $region60: #{tpu_custom_call.1} parent=1 // pred_region
      _
    $region61: #{tpu_custom_call.1} parent=1 // pred_fallthru
      _
    // Predicated region
    $region62: #{tpu_custom_call.1} parent=1 // pred_check
      _
    $region63: #{tpu_custom_call.1} parent=1 // pred_check_branch
      %72 = sbr.rel (0) target = $region65
    $region64: #{tpu_custom_call.1} parent=1 // pred_region
      _
    $region65: #{tpu_custom_call.1} parent=1 // pred_fallthru
      _
    // Predicated region
    $region66: #{tpu_custom_call.1} parent=1 // pred_check
      _
    $region67: #{tpu_custom_call.1} parent=1 // pred_check_branch
      %74 = sbr.rel (0) target = $region69
    $region68: #{tpu_custom_call.1} parent=1 // pred_region
      _
    $region69: #{tpu_custom_call.1} parent=1 // pred_fallthru
      _
    // Predicated region
    $region70: #{tpu_custom_call.1} parent=1 // pred_check
      _
    $region71: #{tpu_custom_call.1} parent=1 // pred_check_branch
      %76 = sbr.rel (0) target = $region73
    $region72: #{tpu_custom_call.1} parent=1 // pred_region
      _
    $region73: #{tpu_custom_call.1} parent=1 // pred_fallthru
      _
    // Predicated region
    $region74: #{tpu_custom_call.1} parent=1 // pred_check
      _
    $region75: #{tpu_custom_call.1} parent=1 // pred_check_branch
      %78 = sbr.rel (0) target = $region77
    $region76: #{tpu_custom_call.1} parent=1 // pred_region
      _
    $region77: #{tpu_custom_call.1} parent=1 // pred_fallthru
      _
    // Predicated region
    $region78: #{tpu_custom_call.1} parent=1 // pred_check
      _
    $region79: #{tpu_custom_call.1} parent=1 // pred_check_branch
      %80 = sbr.rel (0) target = $region81
    $region80: #{tpu_custom_call.1} parent=1 // pred_region
      %82 = dma.done [#allocation5], 256
    $region81: #{tpu_custom_call.1} parent=1 // pred_fallthru
      _
    %v83 = vld [vmem:[#allocation4] sm:$0xff]
    %v84 = vld [vmem:[#allocation4 + $0x8] sm:$0xff]
    %v85 = vld [vmem:[%s1] sm:$0xff]
    %v86 = vld [vmem:[%s1 + $0x8] sm:$0xff]
    %v87 = vld [vmem:[%s1 + $0x10] sm:$0xff]
    %v88 = vld [vmem:[%s1 + $0x18] sm:$0xff]
    %v89 = vld [vmem:[%s1 + $0x20] sm:$0xff]
    %v90 = vld [vmem:[%s1 + $0x28] sm:$0xff]
    %v91 = vld [vmem:[%s1 + $0x30] sm:$0xff]
    %v92 = vld [vmem:[%s1 + $0x38] sm:$0xff]
    %v93 = vld [vmem:[%s2] sm:$0x3]
    %v95 = vperm.slane %v93, 0
    %v96 = vperm.slane %v93, 1
    %vm99 = vcmask 261120
    %v101 = vsel %vm99, %v83, 0
    %v104 = vsel %vm99, %v84, 0
    %106 = vmatpush.msra.mxu0 0.0
    %107 = vmatpush.msra.mxu0 0.0
    %108 = vmatpush.msra.mxu0 0.0
    %109 = vmatpush.msra.mxu0 0.0
    %110 = vmatpush.msra.mxu0 0.0
    %111 = vmatpush.msra.mxu0 0.0
    %112 = vmatpush.msra.mxu0 0.0
    %113 = vmatpush.msra.mxu0 0.0
    %114 = vmatpush.msra.mxu0 0.0
    %115 = vmatpush.msra.mxu0 0.0
    %116 = vmatpush.msra.mxu0 0.0
    %117 = vmatpush.msra.mxu0 0.0
    %118 = vmatpush.msra.mxu0 %v91
    %119 = vmatpush.msra.mxu0 %v89
    %120 = vmatpush.msra.mxu0 %v87
    %121 = vmatpush.msra.mxu0 %v85
    %122 = vmatmul.f32.gmra.mxu0 %v101
    %v123 = vpop.f32.mrf.mxu0
    %v124 = vadd.f32 %v95, %v123
    %125 = vmatmul.f32.gmra.mxu0 %v104
    %v126 = vpop.f32.mrf.mxu0
    %v127 = vadd.f32 %v95, %v126
    %128 = vdwg.mxu0
    %129 = vmatpush.msra.mxu0 0.0
    %130 = vmatpush.msra.mxu0 0.0
    %131 = vmatpush.msra.mxu0 0.0
    %132 = vmatpush.msra.mxu0 0.0
    %133 = vmatpush.msra.mxu0 0.0
    %134 = vmatpush.msra.mxu0 0.0
    %135 = vmatpush.msra.mxu0 0.0
    %136 = vmatpush.msra.mxu0 0.0
    %137 = vmatpush.msra.mxu0 0.0
    %138 = vmatpush.msra.mxu0 0.0
    %139 = vmatpush.msra.mxu0 0.0
    %140 = vmatpush.msra.mxu0 0.0
    %141 = vmatpush.msra.mxu0 %v92
    %142 = vmatpush.msra.mxu0 %v90
    %143 = vmatpush.msra.mxu0 %v88
    %144 = vmatpush.msra.mxu0 %v86
    %145 = vmatmul.f32.gmra.mxu0 %v101
    %v146 = vpop.f32.mrf.mxu0
    %v147 = vadd.f32 %v96, %v146
    %148 = vmatmul.f32.gmra.mxu0 %v104
    %v149 = vpop.f32.mrf.mxu0
    %v150 = vadd.f32 %v96, %v149
    %151 = vdwg.mxu0
    %v152 = vld [vmem:[%s3] sm:$0xff]
    %v153 = vld [vmem:[%s3 + $0x8] sm:$0xff]
    %v154 = vld [vmem:[%s3 + $0x10] sm:$0xff]
    %v155 = vld [vmem:[%s3 + $0x18] sm:$0xff]
    %v156 = vld [vmem:[%s4] sm:$0x1]
    %v157 = vld [vmem:[%s5] sm:$0xff]
    %v158 = vld [vmem:[%s5 + $0x8] sm:$0xff]
    %v159 = vld [vmem:[%s5 + $0x10] sm:$0xff]
    %v160 = vld [vmem:[%s5 + $0x18] sm:$0xff]
    %v161 = vld [vmem:[%s6] sm:$0x1]
    %v163 = vperm.slane %v156, 0
    %v166 = vsel %vm99, 0.0, 0
    %168 = vmatpush.msra.mxu0 0.0
    %169 = vmatpush.msra.mxu0 0.0
    %170 = vmatpush.msra.mxu0 0.0
    %171 = vmatpush.msra.mxu0 0.0
    %172 = vmatpush.msra.mxu0 0.0
    %173 = vmatpush.msra.mxu0 0.0
    %174 = vmatpush.msra.mxu0 0.0
    %175 = vmatpush.msra.mxu0 0.0
    %176 = vmatpush.msra.mxu0 0.0
    %177 = vmatpush.msra.mxu0 0.0
    %178 = vmatpush.msra.mxu0 0.0
    %179 = vmatpush.msra.mxu0 0.0
    %180 = vmatpush.msra.mxu0 %v155
    %181 = vmatpush.msra.mxu0 %v154
    %182 = vmatpush.msra.mxu0 %v153
    %183 = vmatpush.msra.mxu0 %v152
    %184 = vmatmul.f32.gmra.mxu0 %v166
    %v185 = vpop.f32.mrf.mxu0
    %v186 = vadd.f32 %v163, %v185
    %187 = vdwg.mxu0
    %v188 = vadd.f32 %v124, %v186
    %v189 = vxor.u32 %v188, 2147483648
    %v190 = vmul.f32 %v189, 1.442695
    %v191 = vpow.pop %v190
    %v192 = vadd.f32 %v191, 1.0
    %v193 = vrcp.pop %v192
    %v194 = vmul.f32 %v192, %v193
    %v195 = vsub.f32 1.0, %v194
    %v196 = vmul.f32 %v193, %v195
    %v197 = vadd.f32 %v193, %v196
    %vm198 = vweird.f32 %v192
    %vm199 = vweird.f32 %v193
    %vm200 = vmor %vm198, %vm199
    %v201 = vsel %vm200, %v193, %v197
    %v202 = vand.u32 2147483647, %v192
    %vm203 = vcmp.eq.f32.partialorder %v202, 8.507059e+37
    %v204 = vand.u32 %v192, 2147483648
    %v205 = vor.u32 1.1754944e-38, %v204
    %v206 = vsel %vm203, %v205, %v201
    %v207 = vmul.f32 1.0, %v206
    %209 = vrot.lane.b32.xlu0 %v186, 64
    %v210 = vpop.permute.xlu0 %209
    %v212 = vmul.f32 %v207, %v210
    %214 = vrot.lane.b32.xlu0 %v212, 64
    %v215 = vpop.permute.xlu0 %214
    %v217 = vadd.f32 %v124, %v215
    %v218 = vtanh.pop %v217
    %v219 = vsub.f32 1.0, %v207
    %221 = vrot.lane.b32.xlu0 %v218, 96
    %v222 = vpop.permute.xlu0 %221
    %v224 = vmul.f32 %v219, %v222
    %v225 = vmul.f32 %v207, 0.0
    %v226 = vadd.f32 %v224, %v225
    %v228 = vperm.slane %v161, 0
    %230 = vmatpush.msra.mxu0 0.0
    %231 = vmatpush.msra.mxu0 0.0
    %232 = vmatpush.msra.mxu0 0.0
    %233 = vmatpush.msra.mxu0 0.0
    %234 = vmatpush.msra.mxu0 0.0
    %235 = vmatpush.msra.mxu0 0.0
    %236 = vmatpush.msra.mxu0 0.0
    %237 = vmatpush.msra.mxu0 0.0
    %238 = vmatpush.msra.mxu0 0.0
    %239 = vmatpush.msra.mxu0 0.0
    %240 = vmatpush.msra.mxu0 0.0
    %241 = vmatpush.msra.mxu0 0.0
    %242 = vmatpush.msra.mxu0 %v160
    %243 = vmatpush.msra.mxu0 %v159
    %244 = vmatpush.msra.mxu0 %v158
    %245 = vmatpush.msra.mxu0 %v157
    %246 = vmatmul.f32.gmra.mxu0 %v166
    %v247 = vpop.f32.mrf.mxu0
    %v248 = vadd.f32 %v228, %v247
    %249 = vdwg.mxu0
    %v251 = vrot.slane %v248, 2
    %252 = vrot.lane.b32.xlu0 %v251, 96
    %v253 = vpop.permute.xlu0 %252
    %v255 = vadd.f32 %v127, %v253
    %v256 = vxor.u32 %v255, 2147483648
    %v257 = vmul.f32 %v256, 1.442695
    %v258 = vpow.pop %v257
    %v259 = vadd.f32 %v258, 1.0
    %v260 = vrcp.pop %v259
    %v261 = vmul.f32 %v259, %v260
    %v262 = vsub.f32 1.0, %v261
    %v263 = vmul.f32 %v260, %v262
    %v264 = vadd.f32 %v260, %v263
    %vm265 = vweird.f32 %v259
    %vm266 = vweird.f32 %v260
    %vm267 = vmor %vm265, %vm266
    %v268 = vsel %vm267, %v260, %v264
    %v269 = vand.u32 2147483647, %v259
    %vm270 = vcmp.eq.f32.partialorder %v269, 8.507059e+37
    %v271 = vand.u32 %v259, 2147483648
    %v272 = vor.u32 1.1754944e-38, %v271
    %v273 = vsel %vm270, %v272, %v268
    %v274 = vmul.f32 1.0, %v273
    %v275 = vadd.f32 %v150, %v253
    %v276 = vxor.u32 %v275, 2147483648
    %v277 = vmul.f32 %v276, 1.442695
    %v278 = vpow.pop %v277
    %v279 = vadd.f32 %v278, 1.0
    %v280 = vrcp.pop %v279
    %v281 = vmul.f32 %v279, %v280
    %v282 = vsub.f32 1.0, %v281
    %v283 = vmul.f32 %v280, %v282
    %v284 = vadd.f32 %v280, %v283
    %vm285 = vweird.f32 %v279
    %vm286 = vweird.f32 %v280
    %vm287 = vmor %vm285, %vm286
    %v288 = vsel %vm287, %v280, %v284
    %v289 = vand.u32 2147483647, %v279
    %vm290 = vcmp.eq.f32.partialorder %v289, 8.507059e+37
    %v291 = vand.u32 %v279, 2147483648
    %v292 = vor.u32 1.1754944e-38, %v291
    %v293 = vsel %vm290, %v292, %v288
    %v294 = vmul.f32 1.0, %v293
    %295 = vrot.lane.b32.xlu0 %v251, 32
    %v296 = vpop.permute.xlu0 %295
    %v298 = vmul.f32 %v274, %v296
    %300 = vrot.lane.b32.xlu0 %v298, 64
    %v301 = vpop.permute.xlu0 %300
    %v303 = vadd.f32 %v150, %v301
    %v304 = vtanh.pop %v303
    %v305 = vsub.f32 1.0, %v294
    %307 = vrot.lane.b32.xlu0 %v304, 96
    %v308 = vpop.permute.xlu0 %307
    %v310 = vmul.f32 %v305, %v308
    %v311 = vmul.f32 %v294, 0.0
    %v312 = vadd.f32 %v310, %v311
    %314 = vrot.lane.b32.xlu0 %v226, 96
    %v315 = vpop.permute.xlu0 %314
    %v316 = vsel %vm99, %v315, 0
    %318 = vmatpush.msra.mxu0 0.0
    %319 = vmatpush.msra.mxu0 0.0
    %320 = vmatpush.msra.mxu0 0.0
    %321 = vmatpush.msra.mxu0 0.0
    %322 = vmatpush.msra.mxu0 0.0
    %323 = vmatpush.msra.mxu0 0.0
    %324 = vmatpush.msra.mxu0 0.0
    %325 = vmatpush.msra.mxu0 0.0
    %326 = vmatpush.msra.mxu0 0.0
    %327 = vmatpush.msra.mxu0 0.0
    %328 = vmatpush.msra.mxu0 0.0
    %329 = vmatpush.msra.mxu0 0.0
    %330 = vmatpush.msra.mxu0 %v155
    %331 = vmatpush.msra.mxu0 %v154
    %332 = vmatpush.msra.mxu0 %v153
    %333 = vmatpush.msra.mxu0 %v152
    %334 = vmatmul.f32.gmra.mxu0 %v316
    %v335 = vpop.f32.mrf.mxu0
    %v336 = vadd.f32 %v163, %v335
    %337 = vdwg.mxu0
    %v339 = vrot.slane %v336, 6
    %v341 = vadd.f32 %v124, %v339
    %v342 = vxor.u32 %v341, 2147483648
    %v343 = vmul.f32 %v342, 1.442695
    %v344 = vpow.pop %v343
    %v345 = vadd.f32 %v344, 1.0
    %v346 = vrcp.pop %v345
    %v347 = vmul.f32 %v345, %v346
    %v348 = vsub.f32 1.0, %v347
    %v349 = vmul.f32 %v346, %v348
    %v350 = vadd.f32 %v346, %v349
    %vm351 = vweird.f32 %v345
    %vm352 = vweird.f32 %v346
    %vm353 = vmor %vm351, %vm352
    %v354 = vsel %vm353, %v346, %v350
    %v355 = vand.u32 2147483647, %v345
    %vm356 = vcmp.eq.f32.partialorder %v355, 8.507059e+37
    %v357 = vand.u32 %v345, 2147483648
    %v358 = vor.u32 1.1754944e-38, %v357
    %v359 = vsel %vm356, %v358, %v354
    %v360 = vmul.f32 1.0, %v359
    %361 = vrot.lane.b32.xlu0 %v339, 64
    %v362 = vpop.permute.xlu0 %361
    %v364 = vmul.f32 %v360, %v362
    %366 = vrot.lane.b32.xlu0 %v364, 64
    %v367 = vpop.permute.xlu0 %366
    %v369 = vadd.f32 %v124, %v367
    %v370 = vtanh.pop %v369
    %v371 = vsub.f32 1.0, %v360
    %373 = vrot.lane.b32.xlu0 %v370, 96
    %v374 = vpop.permute.xlu0 %373
    %v376 = vmul.f32 %v371, %v374
    %v377 = vrot.slane %v226, 6
    %v379 = vmul.f32 %v360, %v377
    %v380 = vadd.f32 %v376, %v379
    %v382 = vrot.slane %v312, 6
    %v383 = vsel %vm99, %v382, 0
    %385 = vmatpush.msra.mxu0 0.0
    %386 = vmatpush.msra.mxu0 0.0
    %387 = vmatpush.msra.mxu0 0.0
    %388 = vmatpush.msra.mxu0 0.0
    %389 = vmatpush.msra.mxu0 0.0
    %390 = vmatpush.msra.mxu0 0.0
    %391 = vmatpush.msra.mxu0 0.0
    %392 = vmatpush.msra.mxu0 0.0
    %393 = vmatpush.msra.mxu0 0.0
    %394 = vmatpush.msra.mxu0 0.0
    %395 = vmatpush.msra.mxu0 0.0
    %396 = vmatpush.msra.mxu0 0.0
    %397 = vmatpush.msra.mxu0 %v160
    %398 = vmatpush.msra.mxu0 %v159
    %399 = vmatpush.msra.mxu0 %v158
    %400 = vmatpush.msra.mxu0 %v157
    %401 = vmatmul.f32.gmra.mxu0 %v383
    %v402 = vpop.f32.mrf.mxu0
    %v403 = vadd.f32 %v228, %v402
    %404 = vdwg.mxu0
    %v406 = vrot.slane %v403, 4
    %407 = vrot.lane.b32.xlu0 %v406, 96
    %v408 = vpop.permute.xlu0 %407
    %v410 = vadd.f32 %v127, %v408
    %v411 = vxor.u32 %v410, 2147483648
    %v412 = vmul.f32 %v411, 1.442695
    %v413 = vpow.pop %v412
    %v414 = vadd.f32 %v413, 1.0
    %v415 = vrcp.pop %v414
    %v416 = vmul.f32 %v414, %v415
    %v417 = vsub.f32 1.0, %v416
    %v418 = vmul.f32 %v415, %v417
    %v419 = vadd.f32 %v415, %v418
    %vm420 = vweird.f32 %v414
    %vm421 = vweird.f32 %v415
    %vm422 = vmor %vm420, %vm421
    %v423 = vsel %vm422, %v415, %v419
    %v424 = vand.u32 2147483647, %v414
    %vm425 = vcmp.eq.f32.partialorder %v424, 8.507059e+37
    %v426 = vand.u32 %v414, 2147483648
    %v427 = vor.u32 1.1754944e-38, %v426
    %v428 = vsel %vm425, %v427, %v423
    %v429 = vmul.f32 1.0, %v428
    %v430 = vadd.f32 %v150, %v408
    %v431 = vxor.u32 %v430, 2147483648
    %v432 = vmul.f32 %v431, 1.442695
    %v433 = vpow.pop %v432
    %v434 = vadd.f32 %v433, 1.0
    %v435 = vrcp.pop %v434
    %v436 = vmul.f32 %v434, %v435
    %v437 = vsub.f32 1.0, %v436
    %v438 = vmul.f32 %v435, %v437
    %v439 = vadd.f32 %v435, %v438
    %vm440 = vweird.f32 %v434
    %vm441 = vweird.f32 %v435
    %vm442 = vmor %vm440, %vm441
    %v443 = vsel %vm442, %v435, %v439
    %v444 = vand.u32 2147483647, %v434
    %vm445 = vcmp.eq.f32.partialorder %v444, 8.507059e+37
    %v446 = vand.u32 %v434, 2147483648
    %v447 = vor.u32 1.1754944e-38, %v446
    %v448 = vsel %vm445, %v447, %v443
    %v449 = vmul.f32 1.0, %v448
    %450 = vrot.lane.b32.xlu0 %v406, 32
    %v451 = vpop.permute.xlu0 %450
    %v453 = vmul.f32 %v429, %v451
    %455 = vrot.lane.b32.xlu0 %v453, 64
    %v456 = vpop.permute.xlu0 %455
    %v458 = vadd.f32 %v150, %v456
    %v459 = vtanh.pop %v458
    %v460 = vsub.f32 1.0, %v449
    %462 = vrot.lane.b32.xlu0 %v459, 96
    %v463 = vpop.permute.xlu0 %462
    %v465 = vmul.f32 %v460, %v463
    %v466 = vrot.slane %v312, 2
    %v468 = vmul.f32 %v449, %v466
    %v469 = vadd.f32 %v465, %v468
    %v471 = vrot.slane %v380, 2
    %472 = vrot.lane.b32.xlu0 %v471, 96
    %v473 = vpop.permute.xlu0 %472
    %v474 = vsel %vm99, %v473, 0
    %476 = vmatpush.msra.mxu0 0.0
    %477 = vmatpush.msra.mxu0 0.0
    %478 = vmatpush.msra.mxu0 0.0
    %479 = vmatpush.msra.mxu0 0.0
    %480 = vmatpush.msra.mxu0 0.0
    %481 = vmatpush.msra.mxu0 0.0
    %482 = vmatpush.msra.mxu0 0.0
    %483 = vmatpush.msra.mxu0 0.0
    %484 = vmatpush.msra.mxu0 0.0
    %485 = vmatpush.msra.mxu0 0.0
    %486 = vmatpush.msra.mxu0 0.0
    %487 = vmatpush.msra.mxu0 0.0
    %488 = vmatpush.msra.mxu0 %v155
    %489 = vmatpush.msra.mxu0 %v154
    %490 = vmatpush.msra.mxu0 %v153
    %491 = vmatpush.msra.mxu0 %v152
    %492 = vmatmul.f32.gmra.mxu0 %v474
    %v493 = vpop.f32.mrf.mxu0
    %v494 = vadd.f32 %v163, %v493
    %495 = vdwg.mxu0
    %v497 = vrot.slane %v494, 4
    %v499 = vadd.f32 %v124, %v497
    %v500 = vxor.u32 %v499, 2147483648
    %v501 = vmul.f32 %v500, 1.442695
    %v502 = vpow.pop %v501
    %v503 = vadd.f32 %v502, 1.0
    %v504 = vrcp.pop %v503
    %v505 = vmul.f32 %v503, %v504
    %v506 = vsub.f32 1.0, %v505
    %v507 = vmul.f32 %v504, %v506
    %v508 = vadd.f32 %v504, %v507
    %vm509 = vweird.f32 %v503
    %vm510 = vweird.f32 %v504
    %vm511 = vmor %vm509, %vm510
    %v512 = vsel %vm511, %v504, %v508
    %v513 = vand.u32 2147483647, %v503
    %vm514 = vcmp.eq.f32.partialorder %v513, 8.507059e+37
    %v515 = vand.u32 %v503, 2147483648
    %v516 = vor.u32 1.1754944e-38, %v515
    %v517 = vsel %vm514, %v516, %v512
    %v518 = vmul.f32 1.0, %v517
    %519 = vrot.lane.b32.xlu0 %v497, 64
    %v520 = vpop.permute.xlu0 %519
    %v522 = vmul.f32 %v518, %v520
    %524 = vrot.lane.b32.xlu0 %v522, 64
    %v525 = vpop.permute.xlu0 %524
    %v527 = vadd.f32 %v124, %v525
    %v528 = vtanh.pop %v527
    %v529 = vsub.f32 1.0, %v518
    %531 = vrot.lane.b32.xlu0 %v528, 96
    %v532 = vpop.permute.xlu0 %531
    %v534 = vmul.f32 %v529, %v532
    %v535 = vrot.slane %v380, 6
    %v537 = vmul.f32 %v518, %v535
    %v538 = vadd.f32 %v534, %v537
    %v540 = vrot.slane %v469, 4
    %v541 = vsel %vm99, %v540, 0
    %543 = vmatpush.msra.mxu0 0.0
    %544 = vmatpush.msra.mxu0 0.0
    %545 = vmatpush.msra.mxu0 0.0
    %546 = vmatpush.msra.mxu0 0.0
    %547 = vmatpush.msra.mxu0 0.0
    %548 = vmatpush.msra.mxu0 0.0
    %549 = vmatpush.msra.mxu0 0.0
    %550 = vmatpush.msra.mxu0 0.0
    %551 = vmatpush.msra.mxu0 0.0
    %552 = vmatpush.msra.mxu0 0.0
    %553 = vmatpush.msra.mxu0 0.0
    %554 = vmatpush.msra.mxu0 0.0
    %555 = vmatpush.msra.mxu0 %v160
    %556 = vmatpush.msra.mxu0 %v159
    %557 = vmatpush.msra.mxu0 %v158
    %558 = vmatpush.msra.mxu0 %v157
    %559 = vmatmul.f32.gmra.mxu0 %v541
    %v560 = vpop.f32.mrf.mxu0
    %v561 = vadd.f32 %v228, %v560
    %562 = vdwg.mxu0
    %v564 = vrot.slane %v561, 6
    %565 = vrot.lane.b32.xlu0 %v564, 96
    %v566 = vpop.permute.xlu0 %565
    %v568 = vadd.f32 %v127, %v566
    %v569 = vxor.u32 %v568, 2147483648
    %v570 = vmul.f32 %v569, 1.442695
    %v571 = vpow.pop %v570
    %v572 = vadd.f32 %v571, 1.0
    %v573 = vrcp.pop %v572
    %v574 = vmul.f32 %v572, %v573
    %v575 = vsub.f32 1.0, %v574
    %v576 = vmul.f32 %v573, %v575
    %v577 = vadd.f32 %v573, %v576
    %vm578 = vweird.f32 %v572
    %vm579 = vweird.f32 %v573
    %vm580 = vmor %vm578, %vm579
    %v581 = vsel %vm580, %v573, %v577
    %v582 = vand.u32 2147483647, %v572
    %vm583 = vcmp.eq.f32.partialorder %v582, 8.507059e+37
    %v584 = vand.u32 %v572, 2147483648
    %v585 = vor.u32 1.1754944e-38, %v584
    %v586 = vsel %vm583, %v585, %v581
    %v587 = vmul.f32 1.0, %v586
    %v588 = vadd.f32 %v150, %v566
    %v589 = vxor.u32 %v588, 2147483648
    %v590 = vmul.f32 %v589, 1.442695
    %v591 = vpow.pop %v590
    %v592 = vadd.f32 %v591, 1.0
    %v593 = vrcp.pop %v592
    %v594 = vmul.f32 %v592, %v593
    %v595 = vsub.f32 1.0, %v594
    %v596 = vmul.f32 %v593, %v595
    %v597 = vadd.f32 %v593, %v596
    %vm598 = vweird.f32 %v592
    %vm599 = vweird.f32 %v593
    %vm600 = vmor %vm598, %vm599
    %v601 = vsel %vm600, %v593, %v597
    %v602 = vand.u32 2147483647, %v592
    %vm603 = vcmp.eq.f32.partialorder %v602, 8.507059e+37
    %v604 = vand.u32 %v592, 2147483648
    %v605 = vor.u32 1.1754944e-38, %v604
    %v606 = vsel %vm603, %v605, %v601
    %v607 = vmul.f32 1.0, %v606
    %608 = vrot.lane.b32.xlu0 %v564, 32
    %v609 = vpop.permute.xlu0 %608
    %v611 = vmul.f32 %v587, %v609
    %613 = vrot.lane.b32.xlu0 %v611, 64
    %v614 = vpop.permute.xlu0 %613
    %v616 = vadd.f32 %v150, %v614
    %v617 = vtanh.pop %v616
    %v618 = vsub.f32 1.0, %v607
    %620 = vrot.lane.b32.xlu0 %v617, 96
    %v621 = vpop.permute.xlu0 %620
    %v623 = vmul.f32 %v618, %v621
    %v624 = vrot.slane %v469, 2
    %v626 = vmul.f32 %v607, %v624
    %v627 = vadd.f32 %v623, %v626
    %v629 = vrot.slane %v538, 4
    %630 = vrot.lane.b32.xlu0 %v629, 96
    %v631 = vpop.permute.xlu0 %630
    %v632 = vsel %vm99, %v631, 0
    %634 = vmatpush.msra.mxu0 0.0
    %635 = vmatpush.msra.mxu0 0.0
    %636 = vmatpush.msra.mxu0 0.0
    %637 = vmatpush.msra.mxu0 0.0
    %638 = vmatpush.msra.mxu0 0.0
    %639 = vmatpush.msra.mxu0 0.0
    %640 = vmatpush.msra.mxu0 0.0
    %641 = vmatpush.msra.mxu0 0.0
    %642 = vmatpush.msra.mxu0 0.0
    %643 = vmatpush.msra.mxu0 0.0
    %644 = vmatpush.msra.mxu0 0.0
    %645 = vmatpush.msra.mxu0 0.0
    %646 = vmatpush.msra.mxu0 %v155
    %647 = vmatpush.msra.mxu0 %v154
    %648 = vmatpush.msra.mxu0 %v153
    %649 = vmatpush.msra.mxu0 %v152
    %650 = vmatmul.f32.gmra.mxu0 %v632
    %v651 = vpop.f32.mrf.mxu0
    %v652 = vadd.f32 %v163, %v651
    %653 = vdwg.mxu0
    %v655 = vrot.slane %v652, 2
    %v657 = vadd.f32 %v124, %v655
    %v658 = vxor.u32 %v657, 2147483648
    %v659 = vmul.f32 %v658, 1.442695
    %v660 = vpow.pop %v659
    %v661 = vadd.f32 %v660, 1.0
    %v662 = vrcp.pop %v661
    %v663 = vmul.f32 %v661, %v662
    %v664 = vsub.f32 1.0, %v663
    %v665 = vmul.f32 %v662, %v664
    %v666 = vadd.f32 %v662, %v665
    %vm667 = vweird.f32 %v661
    %vm668 = vweird.f32 %v662
    %vm669 = vmor %vm667, %vm668
    %v670 = vsel %vm669, %v662, %v666
    %v671 = vand.u32 2147483647, %v661
    %vm672 = vcmp.eq.f32.partialorder %v671, 8.507059e+37
    %v673 = vand.u32 %v661, 2147483648
    %v674 = vor.u32 1.1754944e-38, %v673
    %v675 = vsel %vm672, %v674, %v670
    %v676 = vmul.f32 1.0, %v675
    %677 = vrot.lane.b32.xlu0 %v655, 64
    %v678 = vpop.permute.xlu0 %677
    %v680 = vmul.f32 %v676, %v678
    %682 = vrot.lane.b32.xlu0 %v680, 64
    %v683 = vpop.permute.xlu0 %682
    %v685 = vadd.f32 %v124, %v683
    %v686 = vtanh.pop %v685
    %v687 = vsub.f32 1.0, %v676
    %689 = vrot.lane.b32.xlu0 %v686, 96
    %v690 = vpop.permute.xlu0 %689
    %v692 = vmul.f32 %v687, %v690
    %v693 = vrot.slane %v538, 6
    %v695 = vmul.f32 %v676, %v693
    %v696 = vadd.f32 %v692, %v695
    %v698 = vrot.slane %v627, 2
    %v699 = vsel %vm99, %v698, 0
    %701 = vmatpush.msra.mxu0 0.0
    %702 = vmatpush.msra.mxu0 0.0
    %703 = vmatpush.msra.mxu0 0.0
    %704 = vmatpush.msra.mxu0 0.0
    %705 = vmatpush.msra.mxu0 0.0
    %706 = vmatpush.msra.mxu0 0.0
    %707 = vmatpush.msra.mxu0 0.0
    %708 = vmatpush.msra.mxu0 0.0
    %709 = vmatpush.msra.mxu0 0.0
    %710 = vmatpush.msra.mxu0 0.0
    %711 = vmatpush.msra.mxu0 0.0
    %712 = vmatpush.msra.mxu0 0.0
    %713 = vmatpush.msra.mxu0 %v160
    %714 = vmatpush.msra.mxu0 %v159
    %715 = vmatpush.msra.mxu0 %v158
    %716 = vmatpush.msra.mxu0 %v157
    %717 = vmatmul.f32.gmra.mxu0 %v699
    %v718 = vpop.f32.mrf.mxu0
    %v719 = vadd.f32 %v228, %v718
    %720 = vdwg.mxu0
    %722 = vrot.lane.b32.xlu0 %v719, 96
    %v723 = vpop.permute.xlu0 %722
    %v725 = vadd.f32 %v127, %v723
    %v726 = vxor.u32 %v725, 2147483648
    %v727 = vmul.f32 %v726, 1.442695
    %v728 = vpow.pop %v727
    %v729 = vadd.f32 %v728, 1.0
    %v730 = vrcp.pop %v729
    %v731 = vmul.f32 %v729, %v730
    %v732 = vsub.f32 1.0, %v731
    %v733 = vmul.f32 %v730, %v732
    %v734 = vadd.f32 %v730, %v733
    %vm735 = vweird.f32 %v729
    %vm736 = vweird.f32 %v730
    %vm737 = vmor %vm735, %vm736
    %v738 = vsel %vm737, %v730, %v734
    %v739 = vand.u32 2147483647, %v729
    %vm740 = vcmp.eq.f32.partialorder %v739, 8.507059e+37
    %v741 = vand.u32 %v729, 2147483648
    %v742 = vor.u32 1.1754944e-38, %v741
    %v743 = vsel %vm740, %v742, %v738
    %v744 = vmul.f32 1.0, %v743
    %v745 = vadd.f32 %v150, %v723
    %v746 = vxor.u32 %v745, 2147483648
    %v747 = vmul.f32 %v746, 1.442695
    %v748 = vpow.pop %v747
    %v749 = vadd.f32 %v748, 1.0
    %v750 = vrcp.pop %v749
    %v751 = vmul.f32 %v749, %v750
    %v752 = vsub.f32 1.0, %v751
    %v753 = vmul.f32 %v750, %v752
    %v754 = vadd.f32 %v750, %v753
    %vm755 = vweird.f32 %v749
    %vm756 = vweird.f32 %v750
    %vm757 = vmor %vm755, %vm756
    %v758 = vsel %vm757, %v750, %v754
    %v759 = vand.u32 2147483647, %v749
    %vm760 = vcmp.eq.f32.partialorder %v759, 8.507059e+37
    %v761 = vand.u32 %v749, 2147483648
    %v762 = vor.u32 1.1754944e-38, %v761
    %v763 = vsel %vm760, %v762, %v758
    %v764 = vmul.f32 1.0, %v763
    %765 = vrot.lane.b32.xlu0 %v719, 32
    %v766 = vpop.permute.xlu0 %765
    %v768 = vmul.f32 %v744, %v766
    %770 = vrot.lane.b32.xlu0 %v768, 64
    %v771 = vpop.permute.xlu0 %770
    %v773 = vadd.f32 %v150, %v771
    %v774 = vtanh.pop %v773
    %v775 = vsub.f32 1.0, %v764
    %777 = vrot.lane.b32.xlu0 %v774, 96
    %v778 = vpop.permute.xlu0 %777
    %v780 = vmul.f32 %v775, %v778
    %v782 = vmul.f32 %v764, %v698
    %v783 = vadd.f32 %v780, %v782
    %v785 = vrot.slane %v696, 6
    %786 = vrot.lane.b32.xlu0 %v785, 96
    %v787 = vpop.permute.xlu0 %786
    %v788 = vsel %vm99, %v787, 0
    %790 = vmatpush.msra.mxu0 0.0
    %791 = vmatpush.msra.mxu0 0.0
    %792 = vmatpush.msra.mxu0 0.0
    %793 = vmatpush.msra.mxu0 0.0
    %794 = vmatpush.msra.mxu0 0.0
    %795 = vmatpush.msra.mxu0 0.0
    %796 = vmatpush.msra.mxu0 0.0
    %797 = vmatpush.msra.mxu0 0.0
    %798 = vmatpush.msra.mxu0 0.0
    %799 = vmatpush.msra.mxu0 0.0
    %800 = vmatpush.msra.mxu0 0.0
    %801 = vmatpush.msra.mxu0 0.0
    %802 = vmatpush.msra.mxu0 %v155
    %803 = vmatpush.msra.mxu0 %v154
    %804 = vmatpush.msra.mxu0 %v153
    %805 = vmatpush.msra.mxu0 %v152
    %806 = vmatmul.f32.gmra.mxu0 %v788
    %v807 = vpop.f32.mrf.mxu0
    %v808 = vadd.f32 %v163, %v807
    %809 = vdwg.mxu0
    %v810 = vadd.f32 %v127, %v808
    %v811 = vxor.u32 %v810, 2147483648
    %v812 = vmul.f32 %v811, 1.442695
    %v813 = vpow.pop %v812
    %v814 = vadd.f32 %v813, 1.0
    %v815 = vrcp.pop %v814
    %v816 = vmul.f32 %v814, %v815
    %v817 = vsub.f32 1.0, %v816
    %v818 = vmul.f32 %v815, %v817
    %v819 = vadd.f32 %v815, %v818
    %vm820 = vweird.f32 %v814
    %vm821 = vweird.f32 %v815
    %vm822 = vmor %vm820, %vm821
    %v823 = vsel %vm822, %v815, %v819
    %v824 = vand.u32 2147483647, %v814
    %vm825 = vcmp.eq.f32.partialorder %v824, 8.507059e+37
    %v826 = vand.u32 %v814, 2147483648
    %v827 = vor.u32 1.1754944e-38, %v826
    %v828 = vsel %vm825, %v827, %v823
    %v829 = vmul.f32 1.0, %v828
    %831 = vrot.lane.b32.xlu0 %v808, 64
    %v832 = vpop.permute.xlu0 %831
    %v834 = vmul.f32 %v829, %v832
    %836 = vrot.lane.b32.xlu0 %v834, 64
    %v837 = vpop.permute.xlu0 %836
    %v839 = vadd.f32 %v127, %v837
    %v840 = vtanh.pop %v839
    %v841 = vsub.f32 1.0, %v829
    %843 = vrot.lane.b32.xlu0 %v840, 96
    %v844 = vpop.permute.xlu0 %843
    %v846 = vmul.f32 %v841, %v844
    %v848 = vmul.f32 %v829, %v785
    %v849 = vadd.f32 %v846, %v848
    %v851 = vsel %vm99, %v783, 0
    %853 = vmatpush.msra.mxu0 0.0
    %854 = vmatpush.msra.mxu0 0.0
    %855 = vmatpush.msra.mxu0 0.0
    %856 = vmatpush.msra.mxu0 0.0
    %857 = vmatpush.msra.mxu0 0.0
    %858 = vmatpush.msra.mxu0 0.0
    %859 = vmatpush.msra.mxu0 0.0
    %860 = vmatpush.msra.mxu0 0.0
    %861 = vmatpush.msra.mxu0 0.0
    %862 = vmatpush.msra.mxu0 0.0
    %863 = vmatpush.msra.mxu0 0.0
    %864 = vmatpush.msra.mxu0 0.0
    %865 = vmatpush.msra.mxu0 %v160
    %866 = vmatpush.msra.mxu0 %v159
    %867 = vmatpush.msra.mxu0 %v158
    %868 = vmatpush.msra.mxu0 %v157
    %869 = vmatmul.f32.gmra.mxu0 %v851
    %v870 = vpop.f32.mrf.mxu0
    %v871 = vadd.f32 %v228, %v870
    %872 = vdwg.mxu0
    %v874 = vrot.slane %v871, 2
    %875 = vrot.lane.b32.xlu0 %v874, 96
    %v876 = vpop.permute.xlu0 %875
    %v878 = vadd.f32 %v124, %v876
    %v879 = vxor.u32 %v878, 2147483648
    %v880 = vmul.f32 %v879, 1.442695
    %v881 = vpow.pop %v880
    %v882 = vadd.f32 %v881, 1.0
    %v883 = vrcp.pop %v882
    %v884 = vmul.f32 %v882, %v883
    %v885 = vsub.f32 1.0, %v884
    %v886 = vmul.f32 %v883, %v885
    %v887 = vadd.f32 %v883, %v886
    %vm888 = vweird.f32 %v882
    %vm889 = vweird.f32 %v883
    %vm890 = vmor %vm888, %vm889
    %v891 = vsel %vm890, %v883, %v887
    %v892 = vand.u32 2147483647, %v882
    %vm893 = vcmp.eq.f32.partialorder %v892, 8.507059e+37
    %v894 = vand.u32 %v882, 2147483648
    %v895 = vor.u32 1.1754944e-38, %v894
    %v896 = vsel %vm893, %v895, %v891
    %v897 = vmul.f32 1.0, %v896
    %v898 = vadd.f32 %v147, %v876
    %v899 = vxor.u32 %v898, 2147483648
    %v900 = vmul.f32 %v899, 1.442695
    %v901 = vpow.pop %v900
    %v902 = vadd.f32 %v901, 1.0
    %v903 = vrcp.pop %v902
    %v904 = vmul.f32 %v902, %v903
    %v905 = vsub.f32 1.0, %v904
    %v906 = vmul.f32 %v903, %v905
    %v907 = vadd.f32 %v903, %v906
    %vm908 = vweird.f32 %v902
    %vm909 = vweird.f32 %v903
    %vm910 = vmor %vm908, %vm909
    %v911 = vsel %vm910, %v903, %v907
    %v912 = vand.u32 2147483647, %v902
    %vm913 = vcmp.eq.f32.partialorder %v912, 8.507059e+37
    %v914 = vand.u32 %v902, 2147483648
    %v915 = vor.u32 1.1754944e-38, %v914
    %v916 = vsel %vm913, %v915, %v911
    %v917 = vmul.f32 1.0, %v916
    %918 = vrot.lane.b32.xlu0 %v874, 32
    %v919 = vpop.permute.xlu0 %918
    %v921 = vmul.f32 %v897, %v919
    %923 = vrot.lane.b32.xlu0 %v921, 64
    %v924 = vpop.permute.xlu0 %923
    %v926 = vadd.f32 %v147, %v924
    %v927 = vtanh.pop %v926
    %v928 = vsub.f32 1.0, %v917
    %930 = vrot.lane.b32.xlu0 %v927, 96
    %v931 = vpop.permute.xlu0 %930
    %v933 = vmul.f32 %v928, %v931
    %v934 = vrot.slane %v783, 2
    %v936 = vmul.f32 %v917, %v934
    %v937 = vadd.f32 %v933, %v936
    %939 = vrot.lane.b32.xlu0 %v849, 96
    %v940 = vpop.permute.xlu0 %939
    %v941 = vsel %vm99, %v940, 0
    %943 = vmatpush.msra.mxu0 0.0
    %944 = vmatpush.msra.mxu0 0.0
    %945 = vmatpush.msra.mxu0 0.0
    %946 = vmatpush.msra.mxu0 0.0
    %947 = vmatpush.msra.mxu0 0.0
    %948 = vmatpush.msra.mxu0 0.0
    %949 = vmatpush.msra.mxu0 0.0
    %950 = vmatpush.msra.mxu0 0.0
    %951 = vmatpush.msra.mxu0 0.0
    %952 = vmatpush.msra.mxu0 0.0
    %953 = vmatpush.msra.mxu0 0.0
    %954 = vmatpush.msra.mxu0 0.0
    %955 = vmatpush.msra.mxu0 %v155
    %956 = vmatpush.msra.mxu0 %v154
    %957 = vmatpush.msra.mxu0 %v153
    %958 = vmatpush.msra.mxu0 %v152
    %959 = vmatmul.f32.gmra.mxu0 %v941
    %v960 = vpop.f32.mrf.mxu0
    %v961 = vadd.f32 %v163, %v960
    %962 = vdwg.mxu0
    %v964 = vrot.slane %v961, 6
    %v966 = vadd.f32 %v127, %v964
    %v967 = vxor.u32 %v966, 2147483648
    %v968 = vmul.f32 %v967, 1.442695
    %v969 = vpow.pop %v968
    %v970 = vadd.f32 %v969, 1.0
    %v971 = vrcp.pop %v970
    %v972 = vmul.f32 %v970, %v971
    %v973 = vsub.f32 1.0, %v972
    %v974 = vmul.f32 %v971, %v973
    %v975 = vadd.f32 %v971, %v974
    %vm976 = vweird.f32 %v970
    %vm977 = vweird.f32 %v971
    %vm978 = vmor %vm976, %vm977
    %v979 = vsel %vm978, %v971, %v975
    %v980 = vand.u32 2147483647, %v970
    %vm981 = vcmp.eq.f32.partialorder %v980, 8.507059e+37
    %v982 = vand.u32 %v970, 2147483648
    %v983 = vor.u32 1.1754944e-38, %v982
    %v984 = vsel %vm981, %v983, %v979
    %v985 = vmul.f32 1.0, %v984
    %986 = vrot.lane.b32.xlu0 %v964, 64
    %v987 = vpop.permute.xlu0 %986
    %v989 = vmul.f32 %v985, %v987
    %991 = vrot.lane.b32.xlu0 %v989, 64
    %v992 = vpop.permute.xlu0 %991
    %v994 = vadd.f32 %v127, %v992
    %v995 = vtanh.pop %v994
    %v996 = vsub.f32 1.0, %v985
    %998 = vrot.lane.b32.xlu0 %v995, 96
    %v999 = vpop.permute.xlu0 %998
    %v1001 = vmul.f32 %v996, %v999
    %v1002 = vrot.slane %v849, 6
    %v1004 = vmul.f32 %v985, %v1002
    %v1005 = vadd.f32 %v1001, %v1004
    %v1007 = vrot.slane %v937, 6
    %v1008 = vsel %vm99, %v1007, 0
    %1010 = vmatpush.msra.mxu0 0.0
    %1011 = vmatpush.msra.mxu0 0.0
    %1012 = vmatpush.msra.mxu0 0.0
    %1013 = vmatpush.msra.mxu0 0.0
    %1014 = vmatpush.msra.mxu0 0.0
    %1015 = vmatpush.msra.mxu0 0.0
    %1016 = vmatpush.msra.mxu0 0.0
    %1017 = vmatpush.msra.mxu0 0.0
    %1018 = vmatpush.msra.mxu0 0.0
    %1019 = vmatpush.msra.mxu0 0.0
    %1020 = vmatpush.msra.mxu0 0.0
    %1021 = vmatpush.msra.mxu0 0.0
    %1022 = vmatpush.msra.mxu0 %v160
    %1023 = vmatpush.msra.mxu0 %v159
    %1024 = vmatpush.msra.mxu0 %v158
    %1025 = vmatpush.msra.mxu0 %v157
    %1026 = vmatmul.f32.gmra.mxu0 %v1008
    %v1027 = vpop.f32.mrf.mxu0
    %v1028 = vadd.f32 %v228, %v1027
    %1029 = vdwg.mxu0
    %v1031 = vrot.slane %v1028, 4
    %1032 = vrot.lane.b32.xlu0 %v1031, 96
    %v1033 = vpop.permute.xlu0 %1032
    %v1035 = vadd.f32 %v124, %v1033
    %v1036 = vxor.u32 %v1035, 2147483648
    %v1037 = vmul.f32 %v1036, 1.442695
    %v1038 = vpow.pop %v1037
    %v1039 = vadd.f32 %v1038, 1.0
    %v1040 = vrcp.pop %v1039
    %v1041 = vmul.f32 %v1039, %v1040
    %v1042 = vsub.f32 1.0, %v1041
    %v1043 = vmul.f32 %v1040, %v1042
    %v1044 = vadd.f32 %v1040, %v1043
    %vm1045 = vweird.f32 %v1039
    %vm1046 = vweird.f32 %v1040
    %vm1047 = vmor %vm1045, %vm1046
    %v1048 = vsel %vm1047, %v1040, %v1044
    %v1049 = vand.u32 2147483647, %v1039
    %vm1050 = vcmp.eq.f32.partialorder %v1049, 8.507059e+37
    %v1051 = vand.u32 %v1039, 2147483648
    %v1052 = vor.u32 1.1754944e-38, %v1051
    %v1053 = vsel %vm1050, %v1052, %v1048
    %v1054 = vmul.f32 1.0, %v1053
    %v1055 = vadd.f32 %v147, %v1033
    %v1056 = vxor.u32 %v1055, 2147483648
    %v1057 = vmul.f32 %v1056, 1.442695
    %v1058 = vpow.pop %v1057
    %v1059 = vadd.f32 %v1058, 1.0
    %v1060 = vrcp.pop %v1059
    %v1061 = vmul.f32 %v1059, %v1060
    %v1062 = vsub.f32 1.0, %v1061
    %v1063 = vmul.f32 %v1060, %v1062
    %v1064 = vadd.f32 %v1060, %v1063
    %vm1065 = vweird.f32 %v1059
    %vm1066 = vweird.f32 %v1060
    %vm1067 = vmor %vm1065, %vm1066
    %v1068 = vsel %vm1067, %v1060, %v1064
    %v1069 = vand.u32 2147483647, %v1059
    %vm1070 = vcmp.eq.f32.partialorder %v1069, 8.507059e+37
    %v1071 = vand.u32 %v1059, 2147483648
    %v1072 = vor.u32 1.1754944e-38, %v1071
    %v1073 = vsel %vm1070, %v1072, %v1068
    %v1074 = vmul.f32 1.0, %v1073
    %1075 = vrot.lane.b32.xlu0 %v1031, 32
    %v1076 = vpop.permute.xlu0 %1075
    %v1078 = vmul.f32 %v1054, %v1076
    %1080 = vrot.lane.b32.xlu0 %v1078, 64
    %v1081 = vpop.permute.xlu0 %1080
    %v1083 = vadd.f32 %v147, %v1081
    %v1084 = vtanh.pop %v1083
    %v1085 = vsub.f32 1.0, %v1074
    %1087 = vrot.lane.b32.xlu0 %v1084, 96
    %v1088 = vpop.permute.xlu0 %1087
    %v1090 = vmul.f32 %v1085, %v1088
    %v1091 = vrot.slane %v937, 2
    %v1093 = vmul.f32 %v1074, %v1091
    %v1094 = vadd.f32 %v1090, %v1093
    %v1096 = vrot.slane %v1005, 2
    %1097 = vrot.lane.b32.xlu0 %v1096, 96
    %v1098 = vpop.permute.xlu0 %1097
    %v1099 = vsel %vm99, %v1098, 0
    %1101 = vmatpush.msra.mxu0 0.0
    %1102 = vmatpush.msra.mxu0 0.0
    %1103 = vmatpush.msra.mxu0 0.0
    %1104 = vmatpush.msra.mxu0 0.0
    %1105 = vmatpush.msra.mxu0 0.0
    %1106 = vmatpush.msra.mxu0 0.0
    %1107 = vmatpush.msra.mxu0 0.0
    %1108 = vmatpush.msra.mxu0 0.0
    %1109 = vmatpush.msra.mxu0 0.0
    %1110 = vmatpush.msra.mxu0 0.0
    %1111 = vmatpush.msra.mxu0 0.0
    %1112 = vmatpush.msra.mxu0 0.0
    %1113 = vmatpush.msra.mxu0 %v155
    %1114 = vmatpush.msra.mxu0 %v154
    %1115 = vmatpush.msra.mxu0 %v153
    %1116 = vmatpush.msra.mxu0 %v152
    %1117 = vmatmul.f32.gmra.mxu0 %v1099
    %v1118 = vpop.f32.mrf.mxu0
    %v1119 = vadd.f32 %v163, %v1118
    %1120 = vdwg.mxu0
    %v1122 = vrot.slane %v1119, 4
    %v1124 = vadd.f32 %v127, %v1122
    %v1125 = vxor.u32 %v1124, 2147483648
    %v1126 = vmul.f32 %v1125, 1.442695
    %v1127 = vpow.pop %v1126
    %v1128 = vadd.f32 %v1127, 1.0
    %v1129 = vrcp.pop %v1128
    %v1130 = vmul.f32 %v1128, %v1129
    %v1131 = vsub.f32 1.0, %v1130
    %v1132 = vmul.f32 %v1129, %v1131
    %v1133 = vadd.f32 %v1129, %v1132
    %vm1134 = vweird.f32 %v1128
    %vm1135 = vweird.f32 %v1129
    %vm1136 = vmor %vm1134, %vm1135
    %v1137 = vsel %vm1136, %v1129, %v1133
    %v1138 = vand.u32 2147483647, %v1128
    %vm1139 = vcmp.eq.f32.partialorder %v1138, 8.507059e+37
    %v1140 = vand.u32 %v1128, 2147483648
    %v1141 = vor.u32 1.1754944e-38, %v1140
    %v1142 = vsel %vm1139, %v1141, %v1137
    %v1143 = vmul.f32 1.0, %v1142
    %1144 = vrot.lane.b32.xlu0 %v1122, 64
    %v1145 = vpop.permute.xlu0 %1144
    %v1147 = vmul.f32 %v1143, %v1145
    %1149 = vrot.lane.b32.xlu0 %v1147, 64
    %v1150 = vpop.permute.xlu0 %1149
    %v1152 = vadd.f32 %v127, %v1150
    %v1153 = vtanh.pop %v1152
    %v1154 = vsub.f32 1.0, %v1143
    %1156 = vrot.lane.b32.xlu0 %v1153, 96
    %v1157 = vpop.permute.xlu0 %1156
    %v1159 = vmul.f32 %v1154, %v1157
    %v1160 = vrot.slane %v1005, 6
    %v1162 = vmul.f32 %v1143, %v1160
    %v1163 = vadd.f32 %v1159, %v1162
    %v1165 = vrot.slane %v1094, 4
    %v1166 = vsel %vm99, %v1165, 0
    %1168 = vmatpush.msra.mxu0 0.0
    %1169 = vmatpush.msra.mxu0 0.0
    %1170 = vmatpush.msra.mxu0 0.0
    %1171 = vmatpush.msra.mxu0 0.0
    %1172 = vmatpush.msra.mxu0 0.0
    %1173 = vmatpush.msra.mxu0 0.0
    %1174 = vmatpush.msra.mxu0 0.0
    %1175 = vmatpush.msra.mxu0 0.0
    %1176 = vmatpush.msra.mxu0 0.0
    %1177 = vmatpush.msra.mxu0 0.0
    %1178 = vmatpush.msra.mxu0 0.0
    %1179 = vmatpush.msra.mxu0 0.0
    %1180 = vmatpush.msra.mxu0 %v160
    %1181 = vmatpush.msra.mxu0 %v159
    %1182 = vmatpush.msra.mxu0 %v158
    %1183 = vmatpush.msra.mxu0 %v157
    %1184 = vmatmul.f32.gmra.mxu0 %v1166
    %v1185 = vpop.f32.mrf.mxu0
    %v1186 = vadd.f32 %v228, %v1185
    %1187 = vdwg.mxu0
    %v1189 = vrot.slane %v1186, 6
    %1190 = vrot.lane.b32.xlu0 %v1189, 96
    %v1191 = vpop.permute.xlu0 %1190
    %v1193 = vadd.f32 %v124, %v1191
    %v1194 = vxor.u32 %v1193, 2147483648
    %v1195 = vmul.f32 %v1194, 1.442695
    %v1196 = vpow.pop %v1195
    %v1197 = vadd.f32 %v1196, 1.0
    %v1198 = vrcp.pop %v1197
    %v1199 = vmul.f32 %v1197, %v1198
    %v1200 = vsub.f32 1.0, %v1199
    %v1201 = vmul.f32 %v1198, %v1200
    %v1202 = vadd.f32 %v1198, %v1201
    %vm1203 = vweird.f32 %v1197
    %vm1204 = vweird.f32 %v1198
    %vm1205 = vmor %vm1203, %vm1204
    %v1206 = vsel %vm1205, %v1198, %v1202
    %v1207 = vand.u32 2147483647, %v1197
    %vm1208 = vcmp.eq.f32.partialorder %v1207, 8.507059e+37
    %v1209 = vand.u32 %v1197, 2147483648
    %v1210 = vor.u32 1.1754944e-38, %v1209
    %v1211 = vsel %vm1208, %v1210, %v1206
    %v1212 = vmul.f32 1.0, %v1211
    %v1213 = vadd.f32 %v147, %v1191
    %v1214 = vxor.u32 %v1213, 2147483648
    %v1215 = vmul.f32 %v1214, 1.442695
    %v1216 = vpow.pop %v1215
    %v1217 = vadd.f32 %v1216, 1.0
    %v1218 = vrcp.pop %v1217
    %v1219 = vmul.f32 %v1217, %v1218
    %v1220 = vsub.f32 1.0, %v1219
    %v1221 = vmul.f32 %v1218, %v1220
    %v1222 = vadd.f32 %v1218, %v1221
    %vm1223 = vweird.f32 %v1217
    %vm1224 = vweird.f32 %v1218
    %vm1225 = vmor %vm1223, %vm1224
    %v1226 = vsel %vm1225, %v1218, %v1222
    %v1227 = vand.u32 2147483647, %v1217
    %vm1228 = vcmp.eq.f32.partialorder %v1227, 8.507059e+37
    %v1229 = vand.u32 %v1217, 2147483648
    %v1230 = vor.u32 1.1754944e-38, %v1229
    %v1231 = vsel %vm1228, %v1230, %v1226
    %v1232 = vmul.f32 1.0, %v1231
    %1233 = vrot.lane.b32.xlu0 %v1189, 32
    %v1234 = vpop.permute.xlu0 %1233
    %v1236 = vmul.f32 %v1212, %v1234
    %1238 = vrot.lane.b32.xlu0 %v1236, 64
    %v1239 = vpop.permute.xlu0 %1238
    %v1241 = vadd.f32 %v147, %v1239
    %v1242 = vtanh.pop %v1241
    %v1243 = vsub.f32 1.0, %v1232
    %1245 = vrot.lane.b32.xlu0 %v1242, 96
    %v1246 = vpop.permute.xlu0 %1245
    %v1248 = vmul.f32 %v1243, %v1246
    %v1249 = vrot.slane %v1094, 2
    %v1251 = vmul.f32 %v1232, %v1249
    %v1252 = vadd.f32 %v1248, %v1251
    %v1254 = vrot.slane %v1163, 4
    %1255 = vrot.lane.b32.xlu0 %v1254, 96
    %v1256 = vpop.permute.xlu0 %1255
    %v1257 = vsel %vm99, %v1256, 0
    %1259 = vmatpush.msra.mxu0 0.0
    %1260 = vmatpush.msra.mxu0 0.0
    %1261 = vmatpush.msra.mxu0 0.0
    %1262 = vmatpush.msra.mxu0 0.0
    %1263 = vmatpush.msra.mxu0 0.0
    %1264 = vmatpush.msra.mxu0 0.0
    %1265 = vmatpush.msra.mxu0 0.0
    %1266 = vmatpush.msra.mxu0 0.0
    %1267 = vmatpush.msra.mxu0 0.0
    %1268 = vmatpush.msra.mxu0 0.0
    %1269 = vmatpush.msra.mxu0 0.0
    %1270 = vmatpush.msra.mxu0 0.0
    %1271 = vmatpush.msra.mxu0 %v155
    %1272 = vmatpush.msra.mxu0 %v154
    %1273 = vmatpush.msra.mxu0 %v153
    %1274 = vmatpush.msra.mxu0 %v152
    %1275 = vmatmul.f32.gmra.mxu0 %v1257
    %v1276 = vpop.f32.mrf.mxu0
    %v1277 = vadd.f32 %v163, %v1276
    %1278 = vdwg.mxu0
    %v1280 = vrot.slane %v1277, 2
    %v1282 = vadd.f32 %v127, %v1280
    %v1283 = vxor.u32 %v1282, 2147483648
    %v1284 = vmul.f32 %v1283, 1.442695
    %v1285 = vpow.pop %v1284
    %v1286 = vadd.f32 %v1285, 1.0
    %v1287 = vrcp.pop %v1286
    %v1288 = vmul.f32 %v1286, %v1287
    %v1289 = vsub.f32 1.0, %v1288
    %v1290 = vmul.f32 %v1287, %v1289
    %v1291 = vadd.f32 %v1287, %v1290
    %vm1292 = vweird.f32 %v1286
    %vm1293 = vweird.f32 %v1287
    %vm1294 = vmor %vm1292, %vm1293
    %v1295 = vsel %vm1294, %v1287, %v1291
    %v1296 = vand.u32 2147483647, %v1286
    %vm1297 = vcmp.eq.f32.partialorder %v1296, 8.507059e+37
    %v1298 = vand.u32 %v1286, 2147483648
    %v1299 = vor.u32 1.1754944e-38, %v1298
    %v1300 = vsel %vm1297, %v1299, %v1295
    %v1301 = vmul.f32 1.0, %v1300
    %1302 = vrot.lane.b32.xlu0 %v1280, 64
    %v1303 = vpop.permute.xlu0 %1302
    %v1305 = vmul.f32 %v1301, %v1303
    %1307 = vrot.lane.b32.xlu0 %v1305, 64
    %v1308 = vpop.permute.xlu0 %1307
    %v1310 = vadd.f32 %v127, %v1308
    %v1311 = vtanh.pop %v1310
    %v1312 = vsub.f32 1.0, %v1301
    %1314 = vrot.lane.b32.xlu0 %v1311, 96
    %v1315 = vpop.permute.xlu0 %1314
    %v1317 = vmul.f32 %v1312, %v1315
    %v1318 = vrot.slane %v1163, 6
    %v1320 = vmul.f32 %v1301, %v1318
    %v1321 = vadd.f32 %v1317, %v1320
    %v1323 = vrot.slane %v1252, 2
    %v1324 = vsel %vm99, %v1323, 0
    %1326 = vmatpush.msra.mxu0 0.0
    %1327 = vmatpush.msra.mxu0 0.0
    %1328 = vmatpush.msra.mxu0 0.0
    %1329 = vmatpush.msra.mxu0 0.0
    %1330 = vmatpush.msra.mxu0 0.0
    %1331 = vmatpush.msra.mxu0 0.0
    %1332 = vmatpush.msra.mxu0 0.0
    %1333 = vmatpush.msra.mxu0 0.0
    %1334 = vmatpush.msra.mxu0 0.0
    %1335 = vmatpush.msra.mxu0 0.0
    %1336 = vmatpush.msra.mxu0 0.0
    %1337 = vmatpush.msra.mxu0 0.0
    %1338 = vmatpush.msra.mxu0 %v160
    %1339 = vmatpush.msra.mxu0 %v159
    %1340 = vmatpush.msra.mxu0 %v158
    %1341 = vmatpush.msra.mxu0 %v157
    %1342 = vmatmul.f32.gmra.mxu0 %v1324
    %v1343 = vpop.f32.mrf.mxu0
    %v1344 = vadd.f32 %v228, %v1343
    %1345 = vdwg.mxu0
    %1347 = vrot.lane.b32.xlu0 %v1344, 96
    %v1348 = vpop.permute.xlu0 %1347
    %v1350 = vadd.f32 %v124, %v1348
    %v1351 = vxor.u32 %v1350, 2147483648
    %v1352 = vmul.f32 %v1351, 1.442695
    %v1353 = vpow.pop %v1352
    %v1354 = vadd.f32 %v1353, 1.0
    %v1355 = vrcp.pop %v1354
    %v1356 = vmul.f32 %v1354, %v1355
    %v1357 = vsub.f32 1.0, %v1356
    %v1358 = vmul.f32 %v1355, %v1357
    %v1359 = vadd.f32 %v1355, %v1358
    %vm1360 = vweird.f32 %v1354
    %vm1361 = vweird.f32 %v1355
    %vm1362 = vmor %vm1360, %vm1361
    %v1363 = vsel %vm1362, %v1355, %v1359
    %v1364 = vand.u32 2147483647, %v1354
    %vm1365 = vcmp.eq.f32.partialorder %v1364, 8.507059e+37
    %v1366 = vand.u32 %v1354, 2147483648
    %v1367 = vor.u32 1.1754944e-38, %v1366
    %v1368 = vsel %vm1365, %v1367, %v1363
    %v1369 = vmul.f32 1.0, %v1368
    %v1370 = vadd.f32 %v147, %v1348
    %v1371 = vxor.u32 %v1370, 2147483648
    %v1372 = vmul.f32 %v1371, 1.442695
    %v1373 = vpow.pop %v1372
    %v1374 = vadd.f32 %v1373, 1.0
    %v1375 = vrcp.pop %v1374
    %v1376 = vmul.f32 %v1374, %v1375
    %v1377 = vsub.f32 1.0, %v1376
    %v1378 = vmul.f32 %v1375, %v1377
    %v1379 = vadd.f32 %v1375, %v1378
    %vm1380 = vweird.f32 %v1374
    %vm1381 = vweird.f32 %v1375
    %vm1382 = vmor %vm1380, %vm1381
    %v1383 = vsel %vm1382, %v1375, %v1379
    %v1384 = vand.u32 2147483647, %v1374
    %vm1385 = vcmp.eq.f32.partialorder %v1384, 8.507059e+37
    %v1386 = vand.u32 %v1374, 2147483648
    %v1387 = vor.u32 1.1754944e-38, %v1386
    %v1388 = vsel %vm1385, %v1387, %v1383
    %v1389 = vmul.f32 1.0, %v1388
    %1390 = vrot.lane.b32.xlu0 %v1344, 32
    %v1391 = vpop.permute.xlu0 %1390
    %v1393 = vmul.f32 %v1369, %v1391
    %1395 = vrot.lane.b32.xlu0 %v1393, 64
    %v1396 = vpop.permute.xlu0 %1395
    %v1398 = vadd.f32 %v147, %v1396
    %v1399 = vtanh.pop %v1398
    %v1400 = vsub.f32 1.0, %v1389
    %1402 = vrot.lane.b32.xlu0 %v1399, 96
    %v1403 = vpop.permute.xlu0 %1402
    %v1405 = vmul.f32 %v1400, %v1403
    %v1407 = vmul.f32 %v1389, %v1323
    %v1408 = vadd.f32 %v1405, %v1407
    %1410 = vrot.lane.b32.xlu0 %v1321, 96
    %v1411 = vpop.permute.xlu0 %1410
    %v1414 = vrot.slane %v1408, 2
    %1415 = vrot.lane.b32.xlu0 %v1414, 32
    %v1416 = vpop.permute.xlu0 %1415
    %v1418 = vsel %vm99, %v1411, %v1416
    %v1419 = vld [vmem:[%s7] sm:$0xff]
    %v1420 = vld [vmem:[%s7 + $0x8] sm:$0xff]
    %v1421 = vld [vmem:[%s7 + $0x10] sm:$0xff]
    %v1422 = vld [vmem:[%s7 + $0x18] sm:$0xff]
    %v1423 = vld [vmem:[%s12] sm:$0xff]
    %v1424 = vld [vmem:[%s12 + $0x8] sm:$0xff]
    %v1425 = vld [vmem:[%s12 + $0x10] sm:$0xff]
    %v1426 = vld [vmem:[%s12 + $0x18] sm:$0xff]
    %v1427 = vld [vmem:[%s12 + $0x20] sm:$0xff]
    %v1428 = vld [vmem:[%s12 + $0x28] sm:$0xff]
    %v1429 = vld [vmem:[%s12 + $0x30] sm:$0xff]
    %v1430 = vld [vmem:[%s12 + $0x38] sm:$0xff]
    %vm1431 = vcmask 523264
    %v1433 = vsel %vm1431, %v1419, 0
    %v1436 = vsel %vm1431, %v1420, 0
    %v1439 = vsel %vm1431, %v1421, 0
    %v1442 = vsel %vm1431, %v1422, 0
    %1444 = vmatpush.msra.mxu0 0.0
    %1445 = vmatpush.msra.mxu0 0.0
    %1446 = vmatpush.msra.mxu0 0.0
    %1447 = vmatpush.msra.mxu0 0.0
    %1448 = vmatpush.msra.mxu0 0.0
    %1449 = vmatpush.msra.mxu0 0.0
    %1450 = vmatpush.msra.mxu0 0.0
    %1451 = vmatpush.msra.mxu0 0.0
    %1452 = vmatpush.msra.mxu0 %v1430
    %1453 = vmatpush.msra.mxu0 %v1429
    %1454 = vmatpush.msra.mxu0 %v1428
    %1455 = vmatpush.msra.mxu0 %v1427
    %1456 = vmatpush.msra.mxu0 %v1426
    %1457 = vmatpush.msra.mxu0 %v1425
    %1458 = vmatpush.msra.mxu0 %v1424
    %1459 = vmatpush.msra.mxu0 %v1423
    %1460 = vmatmul.f32.gmra.mxu0 %v1433
    %v1461 = vpop.f32.mrf.mxu0
    %v1462 = vadd.f32 0.0, %v1461
    %1463 = vmatmul.f32.gmra.mxu0 %v1436
    %v1464 = vpop.f32.mrf.mxu0
    %v1465 = vadd.f32 0.0, %v1464
    %1466 = vmatmul.f32.gmra.mxu0 %v1439
    %v1467 = vpop.f32.mrf.mxu0
    %v1468 = vadd.f32 0.0, %v1467
    %1469 = vmatmul.f32.gmra.mxu0 %v1442
    %v1470 = vpop.f32.mrf.mxu0
    %v1471 = vadd.f32 0.0, %v1470
    %1472 = vdwg.mxu0
    %v1473 = vld [vmem:[%s8] sm:$0xff]
    %v1474 = vld [vmem:[%s8 + $0x8] sm:$0xff]
    %v1475 = vld [vmem:[%s8 + $0x10] sm:$0xff]
    %v1476 = vld [vmem:[%s8 + $0x18] sm:$0xff]
    %v1477 = vld [vmem:[%s8 + $0x20] sm:$0xff]
    %v1478 = vld [vmem:[%s8 + $0x28] sm:$0xff]
    %v1479 = vld [vmem:[%s8 + $0x30] sm:$0xff]
    %v1480 = vld [vmem:[%s8 + $0x38] sm:$0xff]
    %v1481 = vld [vmem:[%s9] sm:$0x1]
    %v1483 = vperm.slane %v1481, 0
    %v1486 = vrot.slane %v1418, 6
    %v1487 = vsel %vm1431, %v1486, 0
    %1489 = vmatpush.msra.mxu0 0.0
    %1490 = vmatpush.msra.mxu0 0.0
    %1491 = vmatpush.msra.mxu0 0.0
    %1492 = vmatpush.msra.mxu0 0.0
    %1493 = vmatpush.msra.mxu0 0.0
    %1494 = vmatpush.msra.mxu0 0.0
    %1495 = vmatpush.msra.mxu0 0.0
    %1496 = vmatpush.msra.mxu0 0.0
    %1497 = vmatpush.msra.mxu0 %v1480
    %1498 = vmatpush.msra.mxu0 %v1479
    %1499 = vmatpush.msra.mxu0 %v1478
    %1500 = vmatpush.msra.mxu0 %v1477
    %1501 = vmatpush.msra.mxu0 %v1476
    %1502 = vmatpush.msra.mxu0 %v1475
    %1503 = vmatpush.msra.mxu0 %v1474
    %1504 = vmatpush.msra.mxu0 %v1473
    %1505 = vmatmul.f32.gmra.mxu0 %v1487
    %v1506 = vpop.f32.mrf.mxu0
    %v1507 = vadd.f32 %v1483, %v1506
    %1508 = vdwg.mxu0
    %v1510 = vrot.slane %v1507, 1
    %v1511 = vperm.slane %v1507, 0
    %v1512 = vperm.slane %v1510, 0
    %v1515 = vadd.f32 %v1462, %v1511
    %v1516 = vadd.f32 %v1465, %v1511
    %v1517 = vadd.f32 %v1468, %v1512
    %v1518 = vadd.f32 %v1471, %v1512
    %v1519 = vtanh.pop %v1515
    %v1520 = vtanh.pop %v1516
    %v1521 = vtanh.pop %v1517
    %v1522 = vtanh.pop %v1518
    %v1523 = vld [vmem:[%s13] sm:$0x1]
    %v1525 = vperm.slane %v1523, 0
    %v1527 = vmul.f32 %v1519, %v1525
    %v1528 = vmul.f32 %v1520, %v1525
    %v1529 = vmul.f32 %v1521, %v1525
    %v1530 = vmul.f32 %v1522, %v1525
    %v1531 = vsel %vm99, %v1527, 0.0
    %1532 = vadd.xlane.f32.xlu0 %v1531
    %v1533 = vpop.xlane.xlu0 %1532
    %v1534 = vsel %vm99, %v1528, 0.0
    %1535 = vadd.xlane.f32.xlu0 %v1534
    %v1536 = vpop.xlane.xlu0 %1535
    %v1537 = vsel %vm99, %v1529, 0.0
    %1538 = vadd.xlane.f32.xlu0 %v1537
    %v1539 = vpop.xlane.xlu0 %1538
    %v1540 = vsel %vm99, %v1530, 0.0
    %1541 = vadd.xlane.f32.xlu0 %v1540
    %v1542 = vpop.xlane.xlu0 %1541
    %v1543 = vld [vmem:[#allocation2] sm:$0x1]
    %v1545 = vperm.slane %v1543, 0
    %v1547 = vadd.f32 %v1533, %v1545
    %v1548 = vadd.f32 %v1536, %v1545
    %v1549 = vadd.f32 %v1539, %v1545
    %v1550 = vadd.f32 %v1542, %v1545
    %vm1551 = vcmask 7168
    %v1552 = vsel %vm1551, %v1547, -inf
    %v1553 = vsel %vm1551, %v1548, -inf
    %v1554 = vmax.f32 %v1552, %v1553
    %v1555 = vrot.slane %v1554, 4
    %v1556 = vmax.f32 %v1554, %v1555
    %v1557 = vrot.slane %v1556, 2
    %v1558 = vmax.f32 %v1556, %v1557
    %v1559 = vrot.slane %v1558, 1
    %v1560 = vmax.f32 %v1558, %v1559
    %v1561 = vsel %vm1551, %v1549, -inf
    %v1562 = vsel %vm1551, %v1550, -inf
    %v1563 = vmax.f32 %v1561, %v1562
    %v1564 = vrot.slane %v1563, 4
    %v1565 = vmax.f32 %v1563, %v1564
    %v1566 = vrot.slane %v1565, 2
    %v1567 = vmax.f32 %v1565, %v1566
    %v1568 = vrot.slane %v1567, 1
    %v1569 = vmax.f32 %v1567, %v1568
    %v1570 = vsub.f32 %v1547, %v1560
    %v1571 = vsub.f32 %v1548, %v1560
    %v1572 = vsub.f32 %v1549, %v1569
    %v1573 = vsub.f32 %v1550, %v1569
    %v1574 = vmul.f32 %v1570, 1.442695
    %v1575 = vpow.pop %v1574
    %v1576 = vmul.f32 %v1571, 1.442695
    %v1577 = vpow.pop %v1576
    %v1578 = vmul.f32 %v1572, 1.442695
    %v1579 = vpow.pop %v1578
    %v1580 = vmul.f32 %v1573, 1.442695
    %v1581 = vpow.pop %v1580
    %v1582 = vsel %vm1551, %v1575, 0.0
    %v1583 = vsel %vm1551, %v1577, 0.0
    %v1584 = vadd.f32 %v1582, %v1583
    %v1585 = vrot.slane %v1584, 4
    %v1586 = vadd.f32 %v1584, %v1585
    %v1587 = vrot.slane %v1586, 2
    %v1588 = vadd.f32 %v1586, %v1587
    %v1589 = vrot.slane %v1588, 1
    %v1590 = vadd.f32 %v1588, %v1589
    %v1591 = vsel %vm1551, %v1579, 0.0
    %v1592 = vsel %vm1551, %v1581, 0.0
    %v1593 = vadd.f32 %v1591, %v1592
    %v1594 = vrot.slane %v1593, 4
    %v1595 = vadd.f32 %v1593, %v1594
    %v1596 = vrot.slane %v1595, 2
    %v1597 = vadd.f32 %v1595, %v1596
    %v1598 = vrot.slane %v1597, 1
    %v1599 = vadd.f32 %v1597, %v1598
    %v1600 = vrcp.pop %v1590
    %v1601 = vrcp.pop %v1599
    %v1602 = vmul.f32 %v1575, %v1600
    %v1603 = vmul.f32 %v1577, %v1600
    %v1604 = vmul.f32 %v1579, %v1601
    %v1605 = vmul.f32 %v1581, %v1601
    %1607 = vset.pattern.permute.xlu0 0
    %1608 = vperm.xlu0 %1607, %v1602
    %v1609 = vpop.permute.xlu0 %1608
    %1612 = vset.pattern.permute.xlu0 0
    %1613 = vperm.xlu0 %1612, %v1603
    %v1614 = vpop.permute.xlu0 %1613
    %1617 = vset.pattern.permute.xlu0 0
    %1618 = vperm.xlu0 %1617, %v1604
    %v1619 = vpop.permute.xlu0 %1618
    %1622 = vset.pattern.permute.xlu0 0
    %1623 = vperm.xlu0 %1622, %v1605
    %v1624 = vpop.permute.xlu0 %1623
    %v1626 = vmul.f32 %v1419, %v1609
    %v1627 = vmul.f32 %v1420, %v1614
    %v1628 = vmul.f32 %v1421, %v1619
    %v1629 = vmul.f32 %v1422, %v1624
    %v1630 = vsel %vm1431, %v1626, 0.0
    %v1631 = vsel %vm1431, %v1627, 0.0
    %v1632 = vadd.f32 %v1630, %v1631
    %v1633 = vrot.slane %v1632, 4
    %v1634 = vadd.f32 %v1632, %v1633
    %v1635 = vrot.slane %v1634, 2
    %v1636 = vadd.f32 %v1634, %v1635
    %v1637 = vrot.slane %v1636, 1
    %v1638 = vadd.f32 %v1636, %v1637
    %v1639 = vsel %vm1431, %v1628, 0.0
    %v1640 = vsel %vm1431, %v1629, 0.0
    %v1641 = vadd.f32 %v1639, %v1640
    %v1642 = vrot.slane %v1641, 4
    %v1643 = vadd.f32 %v1641, %v1642
    %v1644 = vrot.slane %v1643, 2
    %v1645 = vadd.f32 %v1643, %v1644
    %v1646 = vrot.slane %v1645, 1
    %v1647 = vadd.f32 %v1645, %v1646
    %v1648 = vrot.slane %v1418, 7
    %v1651 = vadd.f32 %v1638, %v1486
    %v1652 = vadd.f32 %v1647, %v1648
    %v1653 = vld [vmem:[%s10] sm:$0xff]
    %v1654 = vld [vmem:[%s10 + $0x8] sm:$0xff]
    %v1655 = vld [vmem:[%s10 + $0x10] sm:$0xff]
    %v1656 = vld [vmem:[%s10 + $0x18] sm:$0xff]
    %v1657 = vld [vmem:[%s10 + $0x20] sm:$0xff]
    %v1658 = vld [vmem:[%s10 + $0x28] sm:$0xff]
    %v1659 = vld [vmem:[%s10 + $0x30] sm:$0xff]
    %v1660 = vld [vmem:[%s10 + $0x38] sm:$0xff]
    %v1661 = vld [vmem:[%s11] sm:$0x1]
    %v1663 = vperm.slane %v1661, 0
    %v1667 = vrot.slane %v1652, 7
    %vm1668 = vcmask 1041409
    %v1669 = vsel %vm1668, %v1667, %v1651
    %v1670 = vsel %vm1431, %v1669, 0
    %1672 = vmatpush.msra.mxu0 0.0
    %1673 = vmatpush.msra.mxu0 0.0
    %1674 = vmatpush.msra.mxu0 0.0
    %1675 = vmatpush.msra.mxu0 0.0
    %1676 = vmatpush.msra.mxu0 0.0
    %1677 = vmatpush.msra.mxu0 0.0
    %1678 = vmatpush.msra.mxu0 0.0
    %1679 = vmatpush.msra.mxu0 0.0
    %1680 = vmatpush.msra.mxu0 %v1660
    %1681 = vmatpush.msra.mxu0 %v1659
    %1682 = vmatpush.msra.mxu0 %v1658
    %1683 = vmatpush.msra.mxu0 %v1657
    %1684 = vmatpush.msra.mxu0 %v1656
    %1685 = vmatpush.msra.mxu0 %v1655
    %1686 = vmatpush.msra.mxu0 %v1654
    %1687 = vmatpush.msra.mxu0 %v1653
    %1688 = vmatmul.f32.gmra.mxu0 %v1670
    %v1689 = vpop.f32.mrf.mxu0
    %v1690 = vadd.f32 %v1663, %v1689
    %1691 = vdwg.mxu0
    %v1693 = vrot.slane %v1690, 1
    %v1694 = vperm.slane %v1690, 0
    %v1695 = vperm.slane %v1693, 0
    %1696 = vrot.lane.b32.xlu0 %v1694, 32
    %v1697 = vpop.permute.xlu0 %1696
    %1698 = vrot.lane.b32.xlu0 %v1695, 32
    %v1699 = vpop.permute.xlu0 %1698
    %v1702 = vadd.f32 %v1462, %v1697
    %v1703 = vadd.f32 %v1465, %v1697
    %v1704 = vadd.f32 %v1468, %v1699
    %v1705 = vadd.f32 %v1471, %v1699
    %v1706 = vtanh.pop %v1702
    %v1707 = vtanh.pop %v1703
    %v1708 = vtanh.pop %v1704
    %v1709 = vtanh.pop %v1705
    %v1710 = vld [vmem:[%s15] sm:$0x1]
    %v1712 = vperm.slane %v1710, 0
    %1713 = vrot.lane.b32.xlu0 %v1712, 32
    %v1714 = vpop.permute.xlu0 %1713
    %v1716 = vmul.f32 %v1706, %v1714
    %v1717 = vmul.f32 %v1707, %v1714
    %v1718 = vmul.f32 %v1708, %v1714
    %v1719 = vmul.f32 %v1709, %v1714
    %1724 = vrot.lane.b32.xlu0 %v1716, 96
    %v1725 = vpop.permute.xlu0 %1724
    %1726 = vrot.lane.b32.xlu0 %v1717, 96
    %v1727 = vpop.permute.xlu0 %1726
    %1728 = vrot.lane.b32.xlu0 %v1718, 96
    %v1729 = vpop.permute.xlu0 %1728
    %1730 = vrot.lane.b32.xlu0 %v1719, 96
    %v1731 = vpop.permute.xlu0 %1730
    %v1736 = vsel %vm99, %v1725, 0.0
    %1737 = vadd.xlane.f32.xlu0 %v1736
    %v1738 = vpop.xlane.xlu0 %1737
    %v1739 = vsel %vm99, %v1727, 0.0
    %1740 = vadd.xlane.f32.xlu0 %v1739
    %v1741 = vpop.xlane.xlu0 %1740
    %v1742 = vsel %vm99, %v1729, 0.0
    %1743 = vadd.xlane.f32.xlu0 %v1742
    %v1744 = vpop.xlane.xlu0 %1743
    %v1745 = vsel %vm99, %v1731, 0.0
    %1746 = vadd.xlane.f32.xlu0 %v1745
    %v1747 = vpop.xlane.xlu0 %1746
    %v1748 = vld [vmem:[#allocation3] sm:$0x1]
    %v1750 = vperm.slane %v1748, 0
    %v1752 = vadd.f32 %v1738, %v1750
    %v1753 = vadd.f32 %v1741, %v1750
    %v1754 = vadd.f32 %v1744, %v1750
    %v1755 = vadd.f32 %v1747, %v1750
    %v1756 = vsel %vm1551, %v1752, -inf
    %v1757 = vsel %vm1551, %v1753, -inf
    %v1758 = vmax.f32 %v1756, %v1757
    %v1759 = vrot.slane %v1758, 4
    %v1760 = vmax.f32 %v1758, %v1759
    %v1761 = vrot.slane %v1760, 2
    %v1762 = vmax.f32 %v1760, %v1761
    %v1763 = vrot.slane %v1762, 1
    %v1764 = vmax.f32 %v1762, %v1763
    %v1765 = vsel %vm1551, %v1754, -inf
    %v1766 = vsel %vm1551, %v1755, -inf
    %v1767 = vmax.f32 %v1765, %v1766
    %v1768 = vrot.slane %v1767, 4
    %v1769 = vmax.f32 %v1767, %v1768
    %v1770 = vrot.slane %v1769, 2
    %v1771 = vmax.f32 %v1769, %v1770
    %v1772 = vrot.slane %v1771, 1
    %v1773 = vmax.f32 %v1771, %v1772
    %v1774 = vsub.f32 %v1752, %v1764
    %v1775 = vsub.f32 %v1753, %v1764
    %v1776 = vsub.f32 %v1754, %v1773
    %v1777 = vsub.f32 %v1755, %v1773
    %v1778 = vmul.f32 %v1774, 1.442695
    %v1779 = vpow.pop %v1778
    %v1780 = vmul.f32 %v1775, 1.442695
    %v1781 = vpow.pop %v1780
    %v1782 = vmul.f32 %v1776, 1.442695
    %v1783 = vpow.pop %v1782
    %v1784 = vmul.f32 %v1777, 1.442695
    %v1785 = vpow.pop %v1784
    %v1786 = vsel %vm1551, %v1779, 0.0
    %v1787 = vsel %vm1551, %v1781, 0.0
    %v1788 = vadd.f32 %v1786, %v1787
    %v1789 = vrot.slane %v1788, 4
    %v1790 = vadd.f32 %v1788, %v1789
    %v1791 = vrot.slane %v1790, 2
    %v1792 = vadd.f32 %v1790, %v1791
    %v1793 = vrot.slane %v1792, 1
    %v1794 = vadd.f32 %v1792, %v1793
    %v1795 = vsel %vm1551, %v1783, 0.0
    %v1796 = vsel %vm1551, %v1785, 0.0
    %v1797 = vadd.f32 %v1795, %v1796
    %v1798 = vrot.slane %v1797, 4
    %v1799 = vadd.f32 %v1797, %v1798
    %v1800 = vrot.slane %v1799, 2
    %v1801 = vadd.f32 %v1799, %v1800
    %v1802 = vrot.slane %v1801, 1
    %v1803 = vadd.f32 %v1801, %v1802
    %v1804 = vrcp.pop %v1794
    %v1805 = vrcp.pop %v1803
    %v1806 = vmul.f32 %v1779, %v1804
    %v1807 = vmul.f32 %v1781, %v1804
    %v1808 = vmul.f32 %v1783, %v1805
    %v1809 = vmul.f32 %v1785, %v1805
    %1811 = vset.pattern.permute.xlu0 0
    %1812 = vperm.xlu0 %1811, %v1806
    %v1813 = vpop.permute.xlu0 %1812
    %1816 = vset.pattern.permute.xlu0 0
    %1817 = vperm.xlu0 %1816, %v1807
    %v1818 = vpop.permute.xlu0 %1817
    %1821 = vset.pattern.permute.xlu0 0
    %1822 = vperm.xlu0 %1821, %v1808
    %v1823 = vpop.permute.xlu0 %1822
    %1826 = vset.pattern.permute.xlu0 0
    %1827 = vperm.xlu0 %1826, %v1809
    %v1828 = vpop.permute.xlu0 %1827
    %v1830 = vmul.f32 %v1419, %v1813
    %v1831 = vmul.f32 %v1420, %v1818
    %v1832 = vmul.f32 %v1421, %v1823
    %v1833 = vmul.f32 %v1422, %v1828
    %v1834 = vsel %vm1431, %v1830, 0.0
    %v1835 = vsel %vm1431, %v1831, 0.0
    %v1836 = vadd.f32 %v1834, %v1835
    %v1837 = vrot.slane %v1836, 4
    %v1838 = vadd.f32 %v1836, %v1837
    %v1839 = vrot.slane %v1838, 2
    %v1840 = vadd.f32 %v1838, %v1839
    %v1841 = vrot.slane %v1840, 1
    %v1842 = vadd.f32 %v1840, %v1841
    %v1843 = vsel %vm1431, %v1832, 0.0
    %v1844 = vsel %vm1431, %v1833, 0.0
    %v1845 = vadd.f32 %v1843, %v1844
    %v1846 = vrot.slane %v1845, 4
    %v1847 = vadd.f32 %v1845, %v1846
    %v1848 = vrot.slane %v1847, 2
    %v1849 = vadd.f32 %v1847, %v1848
    %v1850 = vrot.slane %v1849, 1
    %v1851 = vadd.f32 %v1849, %v1850
    %v1852 = vadd.f32 %v1842, %v1651
    %v1853 = vadd.f32 %v1851, %v1652
    %v1854 = vld [vmem:[%s17] sm:$0xff]
    %v1855 = vld [vmem:[%s17 + $0x8] sm:$0xff]
    %v1856 = vld [vmem:[%s17 + $0x10] sm:$0xff]
    %v1857 = vld [vmem:[%s17 + $0x18] sm:$0xff]
    %v1858 = vld [vmem:[%s17 + $0x20] sm:$0xff]
    %v1859 = vld [vmem:[%s17 + $0x28] sm:$0xff]
    %v1860 = vld [vmem:[%s17 + $0x30] sm:$0xff]
    %v1861 = vld [vmem:[%s17 + $0x38] sm:$0xff]
    %v1862 = vld [vmem:[%s18] sm:$0x1]
    %v1864 = vperm.slane %v1862, 0
    %v1868 = vrot.slane %v1853, 7
    %v1869 = vsel %vm1668, %v1868, %v1852
    %v1870 = vsel %vm1431, %v1869, 0
    %1872 = vmatpush.msra.mxu0 0.0
    %1873 = vmatpush.msra.mxu0 0.0
    %1874 = vmatpush.msra.mxu0 0.0
    %1875 = vmatpush.msra.mxu0 0.0
    %1876 = vmatpush.msra.mxu0 0.0
    %1877 = vmatpush.msra.mxu0 0.0
    %1878 = vmatpush.msra.mxu0 0.0
    %1879 = vmatpush.msra.mxu0 0.0
    %1880 = vmatpush.msra.mxu0 %v1861
    %1881 = vmatpush.msra.mxu0 %v1860
    %1882 = vmatpush.msra.mxu0 %v1859
    %1883 = vmatpush.msra.mxu0 %v1858
    %1884 = vmatpush.msra.mxu0 %v1857
    %1885 = vmatpush.msra.mxu0 %v1856
    %1886 = vmatpush.msra.mxu0 %v1855
    %1887 = vmatpush.msra.mxu0 %v1854
    %1888 = vmatmul.f32.gmra.mxu0 %v1870
    %v1889 = vpop.f32.mrf.mxu0
    %v1890 = vadd.f32 %v1864, %v1889
    %1891 = vdwg.mxu0
    %vm1892 = vcmask 123904
    %v1893 = vsel %vm1892, %v1890, -inf
    %1894 = vmax.xlane.f32.xlu0 %v1893
    %v1895 = vpop.xlane.xlu0 %1894
    %v1896 = vsub.f32 %v1890, %v1895
    %v1897 = vmul.f32 %v1896, 1.442695
    %v1898 = vpow.pop %v1897
    %v1899 = vsel %vm1892, %v1898, 0.0
    %1900 = vadd.xlane.f32.xlu0 %v1899
    %v1901 = vpop.xlane.xlu0 %1900
    %v1902 = vlog2.pop %v1901
    %v1903 = vmul.f32 %v1902, 0.6931472
    %v1904 = vsub.f32 %v1896, %v1903
    %1905 = vst.msk [vmem:[#allocation7] sm:$0x3] %vm1892, %v1904
    // Predicated region
    $region82: #{tpu_custom_call.1} parent=1 // pred_check
      _
    $region83: #{tpu_custom_call.1} parent=1 // pred_check_branch
      %1907 = sbr.rel (0) target = $region85
    $region84: #{tpu_custom_call.1} parent=1 // pred_region
      %1909 = vsyncadd [#allocation6], 0
      %s1911 = sshll.u32 [#allocation7], 4
      %s1912 = int_to_ptr.vmem [resolvable:$true] %s1911
      %s1913 = sshll.u32 %s19, 4
      %s1914 = int_to_ptr.hbm [resolvable:$true] %s1913
      %1916 = dma.vmem_to_hbm [thread:$0]  %s1912, 32, %s1914, [#allocation6]
    $region85: #{tpu_custom_call.1} parent=1 // pred_fallthru
      _
    // Predicated region
    $region86: #{tpu_custom_call.1} parent=1 // pred_check
      _
    $region87: #{tpu_custom_call.1} parent=1 // pred_check_branch
      %1918 = sbr.rel (0) target = $region89
    $region88: #{tpu_custom_call.1} parent=1 // pred_region
      %1920 = dma.done [#allocation6], 32
    $region89: #{tpu_custom_call.1} parent=1 // pred_fallthru
      _
    %1921 = vsyncpa [#allocation5], 1
    %1922 = vsyncpa [#allocation6], 1

</llo_original>
